<compile_context>
chip_gen: v7x
topology: tpu7x:2x2x1
jax: 0.10.0
libtpu: 0.0.40
codegen_flags: <defaults>
</compile_context>

<pallas_src>
import math

import jax
import jax.numpy as jnp
from jax import lax
from jax.experimental import pallas as pl
from jax.experimental.pallas import tpu as pltpu

# ---------------- config (small, MiniLM-like) ----------------
B = 2            # batch
S = 8            # sequence length
H = 128          # hidden size
NUM_HEADS = 4
HEAD_DIM = H // NUM_HEADS
FFN = 256        # intermediate size
LAYERS = 2
VOCAB = 64
LN_EPS = 1e-12

BS = B * S               # rows of the fused activation slab
HS = NUM_HEADS * S       # width of the head-blocked score matrix

WEIGHT_ORDER = ["wqkv", "bqkv", "wo", "bo", "ln1g", "ln1b",
                "w1", "b1", "w2", "b2", "ln2g", "ln2b"]


# ---------------- in-kernel helpers ----------------
def _layer_norm(x, g, b):
    mu = jnp.mean(x, axis=-1, keepdims=True)
    var = jnp.mean((x - mu) ** 2, axis=-1, keepdims=True)
    return (x - mu) * lax.rsqrt(var + LN_EPS) * g + b


def _gelu(x):
    c = math.sqrt(2.0 / math.pi)
    return 0.5 * x * (1.0 + jnp.tanh(c * (x + 0.044715 * x * x * x)))


# ---------------- fused embeddings + encoder + pooling kernel ----------------
def fused_encoder_kernel(onehot_ref, posadd_ref, embg_ref, embb_ref,
                         bias_ref, vmask_ref, poolw_ref, wemb_ref,
                         wqkv_ref, bqkv_ref, wo_ref, bo_ref,
                         ln1g_ref, ln1b_ref, w1_ref, b1_ref,
                         w2_ref, b2_ref, ln2g_ref, ln2b_ref,
                         out_ref, x_scr):
    layer = pl.program_id(0)

    # Layer-0 prologue: embedding lookup as a one-hot matmul + pos/type add + LN.
    @pl.when(layer == 0)
    def _():
        emb = jnp.dot(onehot_ref[...], wemb_ref[...],
                      preferred_element_type=jnp.float32) + posadd_ref[...]
        x_scr[...] = _layer_norm(emb, embg_ref[...], embb_ref[...])

    x = x_scr[...]                                            # (BS, H) f32

    # Fused QKV: one (BS,H)@(H,3H) bf16 matmul, f32 accumulate.
    # 1/sqrt(HEAD_DIM) is pre-folded into the q columns of wqkv/bqkv.
    qkv = jnp.dot(x.astype(jnp.bfloat16), wqkv_ref[0],
                  preferred_element_type=jnp.float32) + bqkv_ref[0]
    q = qkv[:, 0 * H:1 * H]
    k = qkv[:, 1 * H:2 * H]
    v = qkv[:, 2 * H:3 * H]

    vmask = vmask_ref[...]                                    # (HS, H) block-diag head mask

    # Per-batch attention: all heads in one MXU op via head-replicated, masked K/V.
    ctx_rows = []
    for b in range(B):
        r0 = b * S
        q_b = q[r0:r0 + S, :]                                 # (S, H)
        k_b = k[r0:r0 + S, :]
        v_b = v[r0:r0 + S, :]
        k_rep = jnp.concatenate([k_b] * NUM_HEADS, axis=0) * vmask   # (HS, H)
        v_rep = jnp.concatenate([v_b] * NUM_HEADS, axis=0) * vmask   # (HS, H)
        # scores[s_q, h*S+s_k] = q_h . k_h   (contract dim 1 with dim 1: no k^T)
        scores = lax.dot_general(q_b, k_rep, (((1,), (1,)), ((), ())),
                                 preferred_element_type=jnp.float32)  # (S, HS)
        scores = scores + bias_ref[b:b + 1, :]                # additive key mask
        scores = scores - jnp.max(scores, axis=-1, keepdims=True)
        p = jnp.exp(scores)
        # per-head softmax denominator broadcast to each head's lane range
        denom = jnp.dot(p, vmask, preferred_element_type=jnp.float32)   # (S, H)
        ctx_b = jnp.dot(p, v_rep, preferred_element_type=jnp.float32)   # (S, H)
        ctx_rows.append(ctx_b * pl.reciprocal(denom, approx=True))
    ctx = jnp.concatenate(ctx_rows, axis=0)                   # (BS, H) in-register

    attn_out = jnp.dot(ctx.astype(jnp.bfloat16), wo_ref[0],
                       preferred_element_type=jnp.float32) + bo_ref[0]
    h1 = _layer_norm(x + attn_out, ln1g_ref[0], ln1b_ref[0])

    ff = jnp.dot(h1.astype(jnp.bfloat16), w1_ref[0],
                 preferred_element_type=jnp.float32) + b1_ref[0]
    ff = _gelu(ff)
    ff = jnp.dot(ff.astype(jnp.bfloat16), w2_ref[0],
                 preferred_element_type=jnp.float32) + b2_ref[0]
    out = _layer_norm(h1 + ff, ln2g_ref[0], ln2b_ref[0])

    x_scr[...] = out                                          # carry to next layer

    # Mean pooling folded into the last layer's epilogue.
    @pl.when(layer == LAYERS - 1)
    def _():
        out_ref[...] = jnp.dot(poolw_ref[...], out,
                               preferred_element_type=jnp.float32)


def fused_encoder(onehot, posadd, emb_g, emb_b, attn_bias, vmask, pool_w,
                  wemb, stacked):
    weights = [stacked[k] for k in WEIGHT_ORDER]

    const2 = lambda l: (0, 0)
    per_layer = lambda l: (l, 0, 0)

    in_specs = [
        pl.BlockSpec((BS, VOCAB), const2),       # one-hot ids (bf16)
        pl.BlockSpec((BS, H), const2),           # pos + type addend (f32)
        pl.BlockSpec((1, H), const2),            # embedding LN gamma
        pl.BlockSpec((1, H), const2),            # embedding LN beta
        pl.BlockSpec((B, HS), const2),           # head-tiled additive key bias
        pl.BlockSpec((HS, H), const2),           # block-diagonal head mask
        pl.BlockSpec((B, BS), const2),           # mean-pooling matrix
        pl.BlockSpec((VOCAB, H), const2),        # word embedding table (bf16)
    ]
    in_specs += [pl.BlockSpec((1,) + w.shape[1:], per_layer) for w in weights]

    # TODO(synk): on v7x (3.2 TB/s HBM) the 2-step layer grid could be unrolled
    # into one grid step; kept as a grid so layer-weight DMA pipelines on v5e.
    return pl.pallas_call(
        fused_encoder_kernel,
        out_shape=jax.ShapeDtypeStruct((B, H), jnp.float32),
        grid_spec=pltpu.PrefetchScalarGridSpec(
            num_scalar_prefetch=0,
            grid=(LAYERS,),
            in_specs=in_specs,
            out_specs=pl.BlockSpec((B, H), const2),
            scratch_shapes=[pltpu.VMEM((BS, H), jnp.float32)],   # resident activations
        ),
        compiler_params=pltpu.CompilerParams(
            dimension_semantics=("arbitrary",)),
    )(onehot, posadd, emb_g, emb_b, attn_bias, vmask, pool_w, wemb, *weights)


# ---------------- parameter init (deterministic, synthetic) ----------------
def init_params(key):
    def nrm(key, shape, std=0.02):
        return jax.random.normal(key, shape, jnp.float32) * std

    keys = jax.random.split(key, 4 + LAYERS)
    params = {
        "word_emb": nrm(keys[0], (VOCAB, H)),
        "pos_emb": nrm(keys[1], (S, H)),
        "type_emb": nrm(keys[2], (1, H)),
        "emb_ln_g": jnp.ones((1, H), jnp.float32),
        "emb_ln_b": jnp.zeros((1, H), jnp.float32),
    }
    layers = []
    for li in range(LAYERS):
        lk = jax.random.split(keys[4 + li], 6)
        layers.append({
            "wq": nrm(lk[0], (H, H)), "bq": jnp.zeros((1, H), jnp.float32),
            "wk": nrm(lk[1], (H, H)), "bk": jnp.zeros((1, H), jnp.float32),
            "wv": nrm(lk[2], (H, H)), "bv": jnp.zeros((1, H), jnp.float32),
            "wo": nrm(lk[3], (H, H)), "bo": jnp.zeros((1, H), jnp.float32),
            "ln1g": jnp.ones((1, H), jnp.float32), "ln1b": jnp.zeros((1, H), jnp.float32),
            "w1": nrm(lk[4], (H, FFN)), "b1": jnp.zeros((1, FFN), jnp.float32),
            "w2": nrm(lk[5], (FFN, H)), "b2": jnp.zeros((1, H), jnp.float32),
            "ln2g": jnp.ones((1, H), jnp.float32), "ln2b": jnp.zeros((1, H), jnp.float32),
        })
    params["stacked"] = stack_layer_params(layers)
    return params


def stack_layer_params(layers):
    """Stack per-layer weights; fuse QKV; fold 1/sqrt(dH) into q; bf16 matmul weights."""
    scale = 1.0 / math.sqrt(HEAD_DIM)

    def st(name, dtype=jnp.float32):
        return jnp.stack([lp[name] for lp in layers], axis=0).astype(dtype)

    wqkv = jnp.stack(
        [jnp.concatenate([lp["wq"] * scale, lp["wk"], lp["wv"]], axis=1)
         for lp in layers], axis=0).astype(jnp.bfloat16)
    bqkv = jnp.stack(
        [jnp.concatenate([lp["bq"] * scale, lp["bk"], lp["bv"]], axis=1)
         for lp in layers], axis=0)                       # biases stay f32
    return {
        "wqkv": wqkv, "bqkv": bqkv,
        "wo": st("wo", jnp.bfloat16), "bo": st("bo"),
        "ln1g": st("ln1g"), "ln1b": st("ln1b"),
        "w1": st("w1", jnp.bfloat16), "b1": st("b1"),
        "w2": st("w2", jnp.bfloat16), "b2": st("b2"),
        "ln2g": st("ln2g"), "ln2b": st("ln2b"),
    }


# ---------------- full forward (SentenceTransformerModel.forward) ----------------
@jax.jit
def sentence_transformer_forward(params, input_ids, attention_mask):
    mask_f = attention_mask.astype(jnp.float32)                          # (B, S)

    # one-hot ids → embedding gather becomes an in-kernel (BS,VOCAB)@(VOCAB,H) matmul
    onehot = jax.nn.one_hot(input_ids.reshape(BS), VOCAB, dtype=jnp.bfloat16)
    posadd = jnp.tile(params["pos_emb"], (B, 1)) + params["type_emb"]    # (BS, H)

    # head-tiled additive key bias, lane-friendly 2-D layout (B, NH*S)
    attn_bias = jnp.tile((1.0 - mask_f) * (-1e9), (1, NUM_HEADS))

    # block-diagonal head mask: vmask[h*S+s, d] = 1 iff lane d belongs to head h
    head_of_row = jnp.arange(HS) // S
    head_of_col = jnp.arange(H) // HEAD_DIM
    vmask = (head_of_row[:, None] == head_of_col[None, :]).astype(jnp.float32)

    # mean-pooling matrix: pooled = pool_w @ x_flat reproduces MeanPooling.forward
    sum_mask = jnp.maximum(jnp.sum(mask_f, axis=1, keepdims=True), 1e-9)  # (B,1)
    w_rows = mask_f / sum_mask                                            # (B,S)
    pool_w = (jnp.eye(B, dtype=jnp.float32)[:, :, None]
              * w_rows[None, :, :]).reshape(B, BS)

    return fused_encoder(onehot, posadd, params["emb_ln_g"], params["emb_ln_b"],
                         attn_bias, vmask, pool_w,
                         params["word_emb"].astype(jnp.bfloat16),
                         params["stacked"])                               # (B, H)


if __name__ == "__main__":
    key = jax.random.PRNGKey(0)
    pkey, ikey = jax.random.split(key)
    params = init_params(pkey)

    input_ids = jax.random.randint(ikey, (B, S), 0, VOCAB, dtype=jnp.int32)
    # batch 0 fully attended; batch 1 has last 3 tokens padded
    attention_mask = jnp.array(
        [[1, 1, 1, 1, 1, 1, 1, 1],
         [1, 1, 1, 1, 1, 0, 0, 0]], dtype=jnp.int32)

    pooled = sentence_transformer_forward(params, input_ids, attention_mask)
    pooled = jax.block_until_ready(pooled)
    assert pooled.shape == (B, H) and pooled.dtype == jnp.float32
    assert bool(jnp.all(jnp.isfinite(pooled)))
    print("KERNEL_OK")
</pallas_src>

<mosaic_0001>
module attributes {stable_mosaic.version = 11 : i64} {
  func.func @fused_encoder_kernel(%arg0: i32, %arg1: memref<16x64xbf16, #tpu.memory_space<vmem>>, %arg2: memref<16x128xf32, #tpu.memory_space<vmem>>, %arg3: memref<1x128xf32, #tpu.memory_space<vmem>>, %arg4: memref<1x128xf32, #tpu.memory_space<vmem>>, %arg5: memref<2x32xf32, #tpu.memory_space<vmem>>, %arg6: memref<32x128xf32, #tpu.memory_space<vmem>>, %arg7: memref<2x16xf32, #tpu.memory_space<vmem>>, %arg8: memref<64x128xbf16, #tpu.memory_space<vmem>>, %arg9: memref<1x128x384xbf16, #tpu.memory_space<vmem>>, %arg10: memref<1x1x384xf32, #tpu.memory_space<vmem>>, %arg11: memref<1x128x128xbf16, #tpu.memory_space<vmem>>, %arg12: memref<1x1x128xf32, #tpu.memory_space<vmem>>, %arg13: memref<1x1x128xf32, #tpu.memory_space<vmem>>, %arg14: memref<1x1x128xf32, #tpu.memory_space<vmem>>, %arg15: memref<1x128x256xbf16, #tpu.memory_space<vmem>>, %arg16: memref<1x1x256xf32, #tpu.memory_space<vmem>>, %arg17: memref<1x256x128xbf16, #tpu.memory_space<vmem>>, %arg18: memref<1x1x128xf32, #tpu.memory_space<vmem>>, %arg19: memref<1x1x128xf32, #tpu.memory_space<vmem>>, %arg20: memref<1x1x128xf32, #tpu.memory_space<vmem>>, %arg21: memref<2x128xf32, #tpu.memory_space<vmem>>, %arg22: memref<16x128xf32, #tpu.memory_space<vmem>>) attributes {dimension_semantics = [#tpu.dimension_semantics<arbitrary>], iteration_bounds = array<i64: 2>, scalar_prefetch = 0 : i64, scratch_operands = 1 : i64, tpu.core_type = #tpu.core_type<tc>, window_params = [{pipeline_mode = #tpu.pipeline_mode<synchronous>, transform_indices = @transform_0, window_bounds = array<i64: 16, 64>}, {pipeline_mode = #tpu.pipeline_mode<synchronous>, transform_indices = @transform_1, window_bounds = array<i64: 16, 128>}, {pipeline_mode = #tpu.pipeline_mode<synchronous>, transform_indices = @transform_2, window_bounds = array<i64: 1, 128>}, {pipeline_mode = #tpu.pipeline_mode<synchronous>, transform_indices = @transform_3, window_bounds = array<i64: 1, 128>}, {pipeline_mode = #tpu.pipeline_mode<synchronous>, transform_indices = @transform_4, window_bounds = array<i64: 2, 32>}, {pipeline_mode = #tpu.pipeline_mode<synchronous>, transform_indices = @transform_5, window_bounds = array<i64: 32, 128>}, {pipeline_mode = #tpu.pipeline_mode<synchronous>, transform_indices = @transform_6, window_bounds = array<i64: 2, 16>}, {pipeline_mode = #tpu.pipeline_mode<synchronous>, transform_indices = @transform_7, window_bounds = array<i64: 64, 128>}, {transform_indices = @transform_8, window_bounds = array<i64: 1, 128, 384>}, {transform_indices = @transform_9, window_bounds = array<i64: 1, 1, 384>}, {transform_indices = @transform_10, window_bounds = array<i64: 1, 128, 128>}, {transform_indices = @transform_11, window_bounds = array<i64: 1, 1, 128>}, {transform_indices = @transform_12, window_bounds = array<i64: 1, 1, 128>}, {transform_indices = @transform_13, window_bounds = array<i64: 1, 1, 128>}, {transform_indices = @transform_14, window_bounds = array<i64: 1, 128, 256>}, {transform_indices = @transform_15, window_bounds = array<i64: 1, 1, 256>}, {transform_indices = @transform_16, window_bounds = array<i64: 1, 256, 128>}, {transform_indices = @transform_17, window_bounds = array<i64: 1, 1, 128>}, {transform_indices = @transform_18, window_bounds = array<i64: 1, 1, 128>}, {transform_indices = @transform_19, window_bounds = array<i64: 1, 1, 128>}, {pipeline_mode = #tpu.pipeline_mode<synchronous>, transform_indices = @transform_20, window_bounds = array<i64: 2, 128>}]} {
    %c0_i32 = arith.constant 0 : i32
    %0 = arith.cmpi eq, %arg0, %c0_i32 : i32
    %1 = arith.extui %0 : i1 to i32
    %c0_i32_0 = arith.constant 0 : i32
    %2 = arith.cmpi ne, %1, %c0_i32_0 : i32
    scf.if %2 {
      %c0_71 = arith.constant 0 : index
      %c0_72 = arith.constant 0 : index
      %152 = vector.load %arg1[%c0_71, %c0_72] : memref<16x64xbf16, #tpu.memory_space<vmem>>, vector<16x64xbf16>
      %c0_73 = arith.constant 0 : index
      %c0_74 = arith.constant 0 : index
      %153 = vector.load %arg8[%c0_73, %c0_74] : memref<64x128xbf16, #tpu.memory_space<vmem>>, vector<64x128xbf16>
      %cst_75 = arith.constant dense<0.000000e+00> : vector<16x128xf32>
      %154 = tpu.matmul %152, %153, %cst_75 {dimension_numbers = #tpu.dot_dimension_numbers<[1], [0], [0], [1], [0, 0, 1, 1], [], []>} : vector<16x64xbf16>, vector<64x128xbf16>, vector<16x128xf32> -> vector<16x128xf32>
      %c0_76 = arith.constant 0 : index
      %c0_77 = arith.constant 0 : index
      %155 = vector.load %arg2[%c0_76, %c0_77] : memref<16x128xf32, #tpu.memory_space<vmem>>, vector<16x128xf32>
      %156 = arith.addf %154, %155 : vector<16x128xf32>
      %c0_78 = arith.constant 0 : index
      %c0_79 = arith.constant 0 : index
      %157 = vector.load %arg3[%c0_78, %c0_79] : memref<1x128xf32, #tpu.memory_space<vmem>>, vector<1x128xf32>
      %c0_80 = arith.constant 0 : index
      %c0_81 = arith.constant 0 : index
      %158 = vector.load %arg4[%c0_80, %c0_81] : memref<1x128xf32, #tpu.memory_space<vmem>>, vector<1x128xf32>
      %cst_82 = arith.constant dense<0.000000e+00> : vector<16xf32>
      %159 = vector.multi_reduction <add>, %156, %cst_82 [1] : vector<16x128xf32> to vector<16xf32>
      %160 = vector.shape_cast %159 : vector<16xf32> to vector<16x1xf32>
      %cst_83 = arith.constant 1.280000e+02 : f32
      %161 = vector.broadcast %cst_83 : f32 to vector<16x1xf32>
      %162 = arith.divf %160, %161 : vector<16x1xf32>
      %163 = vector.broadcast %162 : vector<16x1xf32> to vector<16x128xf32>
      %164 = arith.subf %156, %163 : vector<16x128xf32>
      %165 = arith.mulf %164, %164 : vector<16x128xf32>
      %cst_84 = arith.constant dense<0.000000e+00> : vector<16xf32>
      %166 = vector.multi_reduction <add>, %165, %cst_84 [1] : vector<16x128xf32> to vector<16xf32>
      %167 = vector.shape_cast %166 : vector<16xf32> to vector<16x1xf32>
      %cst_85 = arith.constant 1.280000e+02 : f32
      %168 = vector.broadcast %cst_85 : f32 to vector<16x1xf32>
      %169 = arith.divf %167, %168 : vector<16x1xf32>
      %170 = vector.broadcast %162 : vector<16x1xf32> to vector<16x128xf32>
      %171 = arith.subf %156, %170 : vector<16x128xf32>
      %cst_86 = arith.constant 9.99999996E-13 : f32
      %172 = vector.broadcast %cst_86 : f32 to vector<16x1xf32>
      %173 = arith.addf %169, %172 : vector<16x1xf32>
      %174 = math.rsqrt %173 : vector<16x1xf32>
      %175 = vector.broadcast %174 : vector<16x1xf32> to vector<16x128xf32>
      %176 = arith.mulf %171, %175 : vector<16x128xf32>
      %177 = vector.broadcast %157 : vector<1x128xf32> to vector<16x128xf32>
      %178 = arith.mulf %176, %177 : vector<16x128xf32>
      %179 = vector.broadcast %158 : vector<1x128xf32> to vector<16x128xf32>
      %180 = arith.addf %178, %179 : vector<16x128xf32>
      %c0_87 = arith.constant 0 : index
      %c0_88 = arith.constant 0 : index
      %181 = vector.load %arg22[%c0_87, %c0_88] : memref<16x128xf32, #tpu.memory_space<vmem>>, vector<16x128xf32>
      tpu.vector_store %arg22[%c0_87, %c0_88], %180 {strides = array<i32>} : memref<16x128xf32, #tpu.memory_space<vmem>>, vector<16x128xf32>,
    } else {
    }
    %c0 = arith.constant 0 : index
    %c0_1 = arith.constant 0 : index
    %3 = vector.load %arg22[%c0, %c0_1] : memref<16x128xf32, #tpu.memory_space<vmem>>, vector<16x128xf32>
    %4 = arith.truncf %3 : vector<16x128xf32> to vector<16x128xbf16>
    %c0_2 = arith.constant 0 : index
    %c0_3 = arith.constant 0 : index
    %c0_4 = arith.constant 0 : index
    %5 = vector.load %arg9[%c0_2, %c0_3, %c0_4] : memref<1x128x384xbf16, #tpu.memory_space<vmem>>, vector<1x128x384xbf16>
    %6 = vector.shape_cast %5 : vector<1x128x384xbf16> to vector<128x384xbf16>
    %cst = arith.constant dense<0.000000e+00> : vector<16x384xf32>
    %7 = tpu.matmul %4, %6, %cst {dimension_numbers = #tpu.dot_dimension_numbers<[1], [0], [0], [1], [0, 0, 1, 1], [], []>} : vector<16x128xbf16>, vector<128x384xbf16>, vector<16x384xf32> -> vector<16x384xf32>
    %c0_5 = arith.constant 0 : index
    %c0_6 = arith.constant 0 : index
    %c0_7 = arith.constant 0 : index
    %8 = vector.load %arg10[%c0_5, %c0_6, %c0_7] : memref<1x1x384xf32, #tpu.memory_space<vmem>>, vector<1x1x384xf32>
    %9 = vector.shape_cast %8 : vector<1x1x384xf32> to vector<1x384xf32>
    %10 = vector.broadcast %9 : vector<1x384xf32> to vector<16x384xf32>
    %11 = arith.addf %7, %10 : vector<16x384xf32>
    %12 = vector.extract_strided_slice %11 {offsets = [0, 0], sizes = [16, 128], strides = [1, 1]} : vector<16x384xf32> to vector<16x128xf32>
    %13 = vector.extract_strided_slice %11 {offsets = [0, 128], sizes = [16, 128], strides = [1, 1]} : vector<16x384xf32> to vector<16x128xf32>
    %14 = vector.extract_strided_slice %11 {offsets = [0, 256], sizes = [16, 128], strides = [1, 1]} : vector<16x384xf32> to vector<16x128xf32>
    %c0_8 = arith.constant 0 : index
    %c0_9 = arith.constant 0 : index
    %15 = vector.load %arg6[%c0_8, %c0_9] : memref<32x128xf32, #tpu.memory_space<vmem>>, vector<32x128xf32>
    %16 = vector.extract_strided_slice %12 {offsets = [0, 0], sizes = [8, 128], strides = [1, 1]} : vector<16x128xf32> to vector<8x128xf32>
    %17 = vector.extract_strided_slice %13 {offsets = [0, 0], sizes = [8, 128], strides = [1, 1]} : vector<16x128xf32> to vector<8x128xf32>
    %18 = vector.extract_strided_slice %14 {offsets = [0, 0], sizes = [8, 128], strides = [1, 1]} : vector<16x128xf32> to vector<8x128xf32>
    %19 = tpu.concatenate %17, %17, %17, %17 in 0 : vector<8x128xf32>, vector<8x128xf32>, vector<8x128xf32>, vector<8x128xf32> -> vector<32x128xf32>
    %20 = arith.mulf %19, %15 : vector<32x128xf32>
    %21 = tpu.concatenate %18, %18, %18, %18 in 0 : vector<8x128xf32>, vector<8x128xf32>, vector<8x128xf32>, vector<8x128xf32> -> vector<32x128xf32>
    %22 = arith.mulf %21, %15 : vector<32x128xf32>
    %cst_10 = arith.constant dense<0.000000e+00> : vector<8x32xf32>
    %23 = tpu.matmul %16, %20, %cst_10 {dimension_numbers = #tpu.dot_dimension_numbers<[1], [1], [0], [0], [0, 0, 1, 0], [], []>} : vector<8x128xf32>, vector<32x128xf32>, vector<8x32xf32> -> vector<8x32xf32>
    %c0_11 = arith.constant 0 : index
    %c0_12 = arith.constant 0 : index
    %24 = vector.load %arg5[%c0_11, %c0_12] : memref<2x32xf32, #tpu.memory_space<vmem>>, vector<1x32xf32>
    %25 = vector.broadcast %24 : vector<1x32xf32> to vector<8x32xf32>
    %26 = arith.addf %23, %25 : vector<8x32xf32>
    %cst_13 = arith.constant dense<0xFF800000> : vector<8xf32>
    %27 = vector.multi_reduction <maximumf>, %26, %cst_13 [1] : vector<8x32xf32> to vector<8xf32>
    %28 = vector.shape_cast %27 : vector<8xf32> to vector<8x1xf32>
    %29 = vector.broadcast %28 : vector<8x1xf32> to vector<8x32xf32>
    %30 = arith.subf %26, %29 : vector<8x32xf32>
    %31 = math.exp %30 : vector<8x32xf32>
    %cst_14 = arith.constant dense<0.000000e+00> : vector<8x128xf32>
    %32 = tpu.matmul %31, %15, %cst_14 {dimension_numbers = #tpu.dot_dimension_numbers<[1], [0], [0], [1], [0, 0, 1, 1], [], []>} : vector<8x32xf32>, vector<32x128xf32>, vector<8x128xf32> -> vector<8x128xf32>
    %cst_15 = arith.constant dense<0.000000e+00> : vector<8x128xf32>
    %33 = tpu.matmul %31, %22, %cst_15 {dimension_numbers = #tpu.dot_dimension_numbers<[1], [0], [0], [1], [0, 0, 1, 1], [], []>} : vector<8x32xf32>, vector<32x128xf32>, vector<8x128xf32> -> vector<8x128xf32>
    %34 = tpu.reciprocal %32 {approx = true} : vector<8x128xf32> -> vector<8x128xf32>
    %35 = arith.mulf %33, %34 : vector<8x128xf32>
    %36 = vector.extract_strided_slice %12 {offsets = [8, 0], sizes = [8, 128], strides = [1, 1]} : vector<16x128xf32> to vector<8x128xf32>
    %37 = vector.extract_strided_slice %13 {offsets = [8, 0], sizes = [8, 128], strides = [1, 1]} : vector<16x128xf32> to vector<8x128xf32>
    %38 = vector.extract_strided_slice %14 {offsets = [8, 0], sizes = [8, 128], strides = [1, 1]} : vector<16x128xf32> to vector<8x128xf32>
    %39 = tpu.concatenate %37, %37, %37, %37 in 0 : vector<8x128xf32>, vector<8x128xf32>, vector<8x128xf32>, vector<8x128xf32> -> vector<32x128xf32>
    %40 = arith.mulf %39, %15 : vector<32x128xf32>
    %41 = tpu.concatenate %38, %38, %38, %38 in 0 : vector<8x128xf32>, vector<8x128xf32>, vector<8x128xf32>, vector<8x128xf32> -> vector<32x128xf32>
    %42 = arith.mulf %41, %15 : vector<32x128xf32>
    %cst_16 = arith.constant dense<0.000000e+00> : vector<8x32xf32>
    %43 = tpu.matmul %36, %40, %cst_16 {dimension_numbers = #tpu.dot_dimension_numbers<[1], [1], [0], [0], [0, 0, 1, 0], [], []>} : vector<8x128xf32>, vector<32x128xf32>, vector<8x32xf32> -> vector<8x32xf32>
    %c1 = arith.constant 1 : index
    %c0_17 = arith.constant 0 : index
    %44 = vector.load %arg5[%c1, %c0_17] : memref<2x32xf32, #tpu.memory_space<vmem>>, vector<1x32xf32>
    %45 = vector.broadcast %44 : vector<1x32xf32> to vector<8x32xf32>
    %46 = arith.addf %43, %45 : vector<8x32xf32>
    %cst_18 = arith.constant dense<0xFF800000> : vector<8xf32>
    %47 = vector.multi_reduction <maximumf>, %46, %cst_18 [1] : vector<8x32xf32> to vector<8xf32>
    %48 = vector.shape_cast %47 : vector<8xf32> to vector<8x1xf32>
    %49 = vector.broadcast %48 : vector<8x1xf32> to vector<8x32xf32>
    %50 = arith.subf %46, %49 : vector<8x32xf32>
    %51 = math.exp %50 : vector<8x32xf32>
    %cst_19 = arith.constant dense<0.000000e+00> : vector<8x128xf32>
    %52 = tpu.matmul %51, %15, %cst_19 {dimension_numbers = #tpu.dot_dimension_numbers<[1], [0], [0], [1], [0, 0, 1, 1], [], []>} : vector<8x32xf32>, vector<32x128xf32>, vector<8x128xf32> -> vector<8x128xf32>
    %cst_20 = arith.constant dense<0.000000e+00> : vector<8x128xf32>
    %53 = tpu.matmul %51, %42, %cst_20 {dimension_numbers = #tpu.dot_dimension_numbers<[1], [0], [0], [1], [0, 0, 1, 1], [], []>} : vector<8x32xf32>, vector<32x128xf32>, vector<8x128xf32> -> vector<8x128xf32>
    %54 = tpu.reciprocal %52 {approx = true} : vector<8x128xf32> -> vector<8x128xf32>
    %55 = arith.mulf %53, %54 : vector<8x128xf32>
    %56 = tpu.concatenate %35, %55 in 0 : vector<8x128xf32>, vector<8x128xf32> -> vector<16x128xf32>
    %57 = arith.truncf %56 : vector<16x128xf32> to vector<16x128xbf16>
    %c0_21 = arith.constant 0 : index
    %c0_22 = arith.constant 0 : index
    %c0_23 = arith.constant 0 : index
    %58 = vector.load %arg11[%c0_21, %c0_22, %c0_23] : memref<1x128x128xbf16, #tpu.memory_space<vmem>>, vector<1x128x128xbf16>
    %59 = vector.shape_cast %58 : vector<1x128x128xbf16> to vector<128x128xbf16>
    %cst_24 = arith.constant dense<0.000000e+00> : vector<16x128xf32>
    %60 = tpu.matmul %57, %59, %cst_24 {dimension_numbers = #tpu.dot_dimension_numbers<[1], [0], [0], [1], [0, 0, 1, 1], [], []>} : vector<16x128xbf16>, vector<128x128xbf16>, vector<16x128xf32> -> vector<16x128xf32>
    %c0_25 = arith.constant 0 : index
    %c0_26 = arith.constant 0 : index
    %c0_27 = arith.constant 0 : index
    %61 = vector.load %arg12[%c0_25, %c0_26, %c0_27] : memref<1x1x128xf32, #tpu.memory_space<vmem>>, vector<1x1x128xf32>
    %62 = vector.shape_cast %61 : vector<1x1x128xf32> to vector<1x128xf32>
    %63 = vector.broadcast %62 : vector<1x128xf32> to vector<16x128xf32>
    %64 = arith.addf %60, %63 : vector<16x128xf32>
    %65 = arith.addf %3, %64 : vector<16x128xf32>
    %c0_28 = arith.constant 0 : index
    %c0_29 = arith.constant 0 : index
    %c0_30 = arith.constant 0 : index
    %66 = vector.load %arg13[%c0_28, %c0_29, %c0_30] : memref<1x1x128xf32, #tpu.memory_space<vmem>>, vector<1x1x128xf32>
    %67 = vector.shape_cast %66 : vector<1x1x128xf32> to vector<1x128xf32>
    %c0_31 = arith.constant 0 : index
    %c0_32 = arith.constant 0 : index
    %c0_33 = arith.constant 0 : index
    %68 = vector.load %arg14[%c0_31, %c0_32, %c0_33] : memref<1x1x128xf32, #tpu.memory_space<vmem>>, vector<1x1x128xf32>
    %69 = vector.shape_cast %68 : vector<1x1x128xf32> to vector<1x128xf32>
    %cst_34 = arith.constant dense<0.000000e+00> : vector<16xf32>
    %70 = vector.multi_reduction <add>, %65, %cst_34 [1] : vector<16x128xf32> to vector<16xf32>
    %71 = vector.shape_cast %70 : vector<16xf32> to vector<16x1xf32>
    %cst_35 = arith.constant 1.280000e+02 : f32
    %72 = vector.broadcast %cst_35 : f32 to vector<16x1xf32>
    %73 = arith.divf %71, %72 : vector<16x1xf32>
    %74 = vector.broadcast %73 : vector<16x1xf32> to vector<16x128xf32>
    %75 = arith.subf %65, %74 : vector<16x128xf32>
    %76 = arith.mulf %75, %75 : vector<16x128xf32>
    %cst_36 = arith.constant dense<0.000000e+00> : vector<16xf32>
    %77 = vector.multi_reduction <add>, %76, %cst_36 [1] : vector<16x128xf32> to vector<16xf32>
    %78 = vector.shape_cast %77 : vector<16xf32> to vector<16x1xf32>
    %cst_37 = arith.constant 1.280000e+02 : f32
    %79 = vector.broadcast %cst_37 : f32 to vector<16x1xf32>
    %80 = arith.divf %78, %79 : vector<16x1xf32>
    %81 = vector.broadcast %73 : vector<16x1xf32> to vector<16x128xf32>
    %82 = arith.subf %65, %81 : vector<16x128xf32>
    %cst_38 = arith.constant 9.99999996E-13 : f32
    %83 = vector.broadcast %cst_38 : f32 to vector<16x1xf32>
    %84 = arith.addf %80, %83 : vector<16x1xf32>
    %85 = math.rsqrt %84 : vector<16x1xf32>
    %86 = vector.broadcast %85 : vector<16x1xf32> to vector<16x128xf32>
    %87 = arith.mulf %82, %86 : vector<16x128xf32>
    %88 = vector.broadcast %67 : vector<1x128xf32> to vector<16x128xf32>
    %89 = arith.mulf %87, %88 : vector<16x128xf32>
    %90 = vector.broadcast %69 : vector<1x128xf32> to vector<16x128xf32>
    %91 = arith.addf %89, %90 : vector<16x128xf32>
    %92 = arith.truncf %91 : vector<16x128xf32> to vector<16x128xbf16>
    %c0_39 = arith.constant 0 : index
    %c0_40 = arith.constant 0 : index
    %c0_41 = arith.constant 0 : index
    %93 = vector.load %arg15[%c0_39, %c0_40, %c0_41] : memref<1x128x256xbf16, #tpu.memory_space<vmem>>, vector<1x128x256xbf16>
    %94 = vector.shape_cast %93 : vector<1x128x256xbf16> to vector<128x256xbf16>
    %cst_42 = arith.constant dense<0.000000e+00> : vector<16x256xf32>
    %95 = tpu.matmul %92, %94, %cst_42 {dimension_numbers = #tpu.dot_dimension_numbers<[1], [0], [0], [1], [0, 0, 1, 1], [], []>} : vector<16x128xbf16>, vector<128x256xbf16>, vector<16x256xf32> -> vector<16x256xf32>
    %c0_43 = arith.constant 0 : index
    %c0_44 = arith.constant 0 : index
    %c0_45 = arith.constant 0 : index
    %96 = vector.load %arg16[%c0_43, %c0_44, %c0_45] : memref<1x1x256xf32, #tpu.memory_space<vmem>>, vector<1x1x256xf32>
    %97 = vector.shape_cast %96 : vector<1x1x256xf32> to vector<1x256xf32>
    %98 = vector.broadcast %97 : vector<1x256xf32> to vector<16x256xf32>
    %99 = arith.addf %95, %98 : vector<16x256xf32>
    %cst_46 = arith.constant 5.000000e-01 : f32
    %100 = vector.broadcast %cst_46 : f32 to vector<16x256xf32>
    %101 = arith.mulf %100, %99 : vector<16x256xf32>
    %cst_47 = arith.constant 4.471500e-02 : f32
    %102 = vector.broadcast %cst_47 : f32 to vector<16x256xf32>
    %103 = arith.mulf %102, %99 : vector<16x256xf32>
    %104 = arith.mulf %103, %99 : vector<16x256xf32>
    %105 = arith.mulf %104, %99 : vector<16x256xf32>
    %106 = arith.addf %99, %105 : vector<16x256xf32>
    %cst_48 = arith.constant 0.797884583 : f32
    %107 = vector.broadcast %cst_48 : f32 to vector<16x256xf32>
    %108 = arith.mulf %107, %106 : vector<16x256xf32>
    %109 = math.tanh %108 : vector<16x256xf32>
    %cst_49 = arith.constant 1.000000e+00 : f32
    %110 = vector.broadcast %cst_49 : f32 to vector<16x256xf32>
    %111 = arith.addf %110, %109 : vector<16x256xf32>
    %112 = arith.mulf %101, %111 : vector<16x256xf32>
    %113 = arith.truncf %112 : vector<16x256xf32> to vector<16x256xbf16>
    %c0_50 = arith.constant 0 : index
    %c0_51 = arith.constant 0 : index
    %c0_52 = arith.constant 0 : index
    %114 = vector.load %arg17[%c0_50, %c0_51, %c0_52] : memref<1x256x128xbf16, #tpu.memory_space<vmem>>, vector<1x256x128xbf16>
    %115 = vector.shape_cast %114 : vector<1x256x128xbf16> to vector<256x128xbf16>
    %cst_53 = arith.constant dense<0.000000e+00> : vector<16x128xf32>
    %116 = tpu.matmul %113, %115, %cst_53 {dimension_numbers = #tpu.dot_dimension_numbers<[1], [0], [0], [1], [0, 0, 1, 1], [], []>} : vector<16x256xbf16>, vector<256x128xbf16>, vector<16x128xf32> -> vector<16x128xf32>
    %c0_54 = arith.constant 0 : index
    %c0_55 = arith.constant 0 : index
    %c0_56 = arith.constant 0 : index
    %117 = vector.load %arg18[%c0_54, %c0_55, %c0_56] : memref<1x1x128xf32, #tpu.memory_space<vmem>>, vector<1x1x128xf32>
    %118 = vector.shape_cast %117 : vector<1x1x128xf32> to vector<1x128xf32>
    %119 = vector.broadcast %118 : vector<1x128xf32> to vector<16x128xf32>
    %120 = arith.addf %116, %119 : vector<16x128xf32>
    %121 = arith.addf %91, %120 : vector<16x128xf32>
    %c0_57 = arith.constant 0 : index
    %c0_58 = arith.constant 0 : index
    %c0_59 = arith.constant 0 : index
    %122 = vector.load %arg19[%c0_57, %c0_58, %c0_59] : memref<1x1x128xf32, #tpu.memory_space<vmem>>, vector<1x1x128xf32>
    %123 = vector.shape_cast %122 : vector<1x1x128xf32> to vector<1x128xf32>
    %c0_60 = arith.constant 0 : index
    %c0_61 = arith.constant 0 : index
    %c0_62 = arith.constant 0 : index
    %124 = vector.load %arg20[%c0_60, %c0_61, %c0_62] : memref<1x1x128xf32, #tpu.memory_space<vmem>>, vector<1x1x128xf32>
    %125 = vector.shape_cast %124 : vector<1x1x128xf32> to vector<1x128xf32>
    %cst_63 = arith.constant dense<0.000000e+00> : vector<16xf32>
    %126 = vector.multi_reduction <add>, %121, %cst_63 [1] : vector<16x128xf32> to vector<16xf32>
    %127 = vector.shape_cast %126 : vector<16xf32> to vector<16x1xf32>
    %cst_64 = arith.constant 1.280000e+02 : f32
    %128 = vector.broadcast %cst_64 : f32 to vector<16x1xf32>
    %129 = arith.divf %127, %128 : vector<16x1xf32>
    %130 = vector.broadcast %129 : vector<16x1xf32> to vector<16x128xf32>
    %131 = arith.subf %121, %130 : vector<16x128xf32>
    %132 = arith.mulf %131, %131 : vector<16x128xf32>
    %cst_65 = arith.constant dense<0.000000e+00> : vector<16xf32>
    %133 = vector.multi_reduction <add>, %132, %cst_65 [1] : vector<16x128xf32> to vector<16xf32>
    %134 = vector.shape_cast %133 : vector<16xf32> to vector<16x1xf32>
    %cst_66 = arith.constant 1.280000e+02 : f32
    %135 = vector.broadcast %cst_66 : f32 to vector<16x1xf32>
    %136 = arith.divf %134, %135 : vector<16x1xf32>
    %137 = vector.broadcast %129 : vector<16x1xf32> to vector<16x128xf32>
    %138 = arith.subf %121, %137 : vector<16x128xf32>
    %cst_67 = arith.constant 9.99999996E-13 : f32
    %139 = vector.broadcast %cst_67 : f32 to vector<16x1xf32>
    %140 = arith.addf %136, %139 : vector<16x1xf32>
    %141 = math.rsqrt %140 : vector<16x1xf32>
    %142 = vector.broadcast %141 : vector<16x1xf32> to vector<16x128xf32>
    %143 = arith.mulf %138, %142 : vector<16x128xf32>
    %144 = vector.broadcast %123 : vector<1x128xf32> to vector<16x128xf32>
    %145 = arith.mulf %143, %144 : vector<16x128xf32>
    %146 = vector.broadcast %125 : vector<1x128xf32> to vector<16x128xf32>
    %147 = arith.addf %145, %146 : vector<16x128xf32>
    %c0_68 = arith.constant 0 : index
    %c0_69 = arith.constant 0 : index
    %148 = vector.load %arg22[%c0_68, %c0_69] : memref<16x128xf32, #tpu.memory_space<vmem>>, vector<16x128xf32>
    tpu.vector_store %arg22[%c0_68, %c0_69], %147 {strides = array<i32>} : memref<16x128xf32, #tpu.memory_space<vmem>>, vector<16x128xf32>,
    %c1_i32 = arith.constant 1 : i32
    %149 = arith.cmpi eq, %arg0, %c1_i32 : i32
    %150 = arith.extui %149 : i1 to i32
    %c0_i32_70 = arith.constant 0 : i32
    %151 = arith.cmpi ne, %150, %c0_i32_70 : i32
    scf.if %151 {
      %c0_71 = arith.constant 0 : index
      %c0_72 = arith.constant 0 : index
      %152 = vector.load %arg7[%c0_71, %c0_72] : memref<2x16xf32, #tpu.memory_space<vmem>>, vector<2x16xf32>
      %cst_73 = arith.constant dense<0.000000e+00> : vector<2x128xf32>
      %153 = tpu.matmul %152, %147, %cst_73 {dimension_numbers = #tpu.dot_dimension_numbers<[1], [0], [0], [1], [0, 0, 1, 1], [], []>} : vector<2x16xf32>, vector<16x128xf32>, vector<2x128xf32> -> vector<2x128xf32>
      %c0_74 = arith.constant 0 : index
      %c0_75 = arith.constant 0 : index
      %154 = vector.load %arg21[%c0_74, %c0_75] : memref<2x128xf32, #tpu.memory_space<vmem>>, vector<2x128xf32>
      tpu.vector_store %arg21[%c0_74, %c0_75], %153 {strides = array<i32>} : memref<2x128xf32, #tpu.memory_space<vmem>>, vector<2x128xf32>,
    } else {
    }
    return
  }
  func.func @transform_0(%arg0: i32) -> (i32, i32) {
    %c0_i32 = arith.constant 0 : i32
    %c0_i32_0 = arith.constant 0 : i32
    %c0_i32_1 = arith.constant 0 : i32
    return %c0_i32, %c0_i32_0 : i32, i32
  }
  func.func @transform_1(%arg0: i32) -> (i32, i32) {
    %c0_i32 = arith.constant 0 : i32
    %c0_i32_0 = arith.constant 0 : i32
    %c0_i32_1 = arith.constant 0 : i32
    return %c0_i32, %c0_i32_0 : i32, i32
  }
  func.func @transform_2(%arg0: i32) -> (i32, i32) {
    %c0_i32 = arith.constant 0 : i32
    %c0_i32_0 = arith.constant 0 : i32
    %c0_i32_1 = arith.constant 0 : i32
    return %c0_i32, %c0_i32_0 : i32, i32
  }
  func.func @transform_3(%arg0: i32) -> (i32, i32) {
    %c0_i32 = arith.constant 0 : i32
    %c0_i32_0 = arith.constant 0 : i32
    %c0_i32_1 = arith.constant 0 : i32
    return %c0_i32, %c0_i32_0 : i32, i32
  }
  func.func @transform_4(%arg0: i32) -> (i32, i32) {
    %c0_i32 = arith.constant 0 : i32
    %c0_i32_0 = arith.constant 0 : i32
    %c0_i32_1 = arith.constant 0 : i32
    return %c0_i32, %c0_i32_0 : i32, i32
  }
  func.func @transform_5(%arg0: i32) -> (i32, i32) {
    %c0_i32 = arith.constant 0 : i32
    %c0_i32_0 = arith.constant 0 : i32
    %c0_i32_1 = arith.constant 0 : i32
    return %c0_i32, %c0_i32_0 : i32, i32
  }
  func.func @transform_6(%arg0: i32) -> (i32, i32) {
    %c0_i32 = arith.constant 0 : i32
    %c0_i32_0 = arith.constant 0 : i32
    %c0_i32_1 = arith.constant 0 : i32
    return %c0_i32, %c0_i32_0 : i32, i32
  }
  func.func @transform_7(%arg0: i32) -> (i32, i32) {
    %c0_i32 = arith.constant 0 : i32
    %c0_i32_0 = arith.constant 0 : i32
    %c0_i32_1 = arith.constant 0 : i32
    return %c0_i32, %c0_i32_0 : i32, i32
  }
  func.func @transform_8(%arg0: i32) -> (i32, i32, i32) {
    %c0_i32 = arith.constant 0 : i32
    %c0_i32_0 = arith.constant 0 : i32
    %c0_i32_1 = arith.constant 0 : i32
    return %arg0, %c0_i32, %c0_i32_0 : i32, i32, i32
  }
  func.func @transform_9(%arg0: i32) -> (i32, i32, i32) {
    %c0_i32 = arith.constant 0 : i32
    %c0_i32_0 = arith.constant 0 : i32
    %c0_i32_1 = arith.constant 0 : i32
    return %arg0, %c0_i32, %c0_i32_0 : i32, i32, i32
  }
  func.func @transform_10(%arg0: i32) -> (i32, i32, i32) {
    %c0_i32 = arith.constant 0 : i32
    %c0_i32_0 = arith.constant 0 : i32
    %c0_i32_1 = arith.constant 0 : i32
    return %arg0, %c0_i32, %c0_i32_0 : i32, i32, i32
  }
  func.func @transform_11(%arg0: i32) -> (i32, i32, i32) {
    %c0_i32 = arith.constant 0 : i32
    %c0_i32_0 = arith.constant 0 : i32
    %c0_i32_1 = arith.constant 0 : i32
    return %arg0, %c0_i32, %c0_i32_0 : i32, i32, i32
  }
  func.func @transform_12(%arg0: i32) -> (i32, i32, i32) {
    %c0_i32 = arith.constant 0 : i32
    %c0_i32_0 = arith.constant 0 : i32
    %c0_i32_1 = arith.constant 0 : i32
    return %arg0, %c0_i32, %c0_i32_0 : i32, i32, i32
  }
  func.func @transform_13(%arg0: i32) -> (i32, i32, i32) {
    %c0_i32 = arith.constant 0 : i32
    %c0_i32_0 = arith.constant 0 : i32
    %c0_i32_1 = arith.constant 0 : i32
    return %arg0, %c0_i32, %c0_i32_0 : i32, i32, i32
  }
  func.func @transform_14(%arg0: i32) -> (i32, i32, i32) {
    %c0_i32 = arith.constant 0 : i32
    %c0_i32_0 = arith.constant 0 : i32
    %c0_i32_1 = arith.constant 0 : i32
    return %arg0, %c0_i32, %c0_i32_0 : i32, i32, i32
  }
  func.func @transform_15(%arg0: i32) -> (i32, i32, i32) {
    %c0_i32 = arith.constant 0 : i32
    %c0_i32_0 = arith.constant 0 : i32
    %c0_i32_1 = arith.constant 0 : i32
    return %arg0, %c0_i32, %c0_i32_0 : i32, i32, i32
  }
  func.func @transform_16(%arg0: i32) -> (i32, i32, i32) {
    %c0_i32 = arith.constant 0 : i32
    %c0_i32_0 = arith.constant 0 : i32
    %c0_i32_1 = arith.constant 0 : i32
    return %arg0, %c0_i32, %c0_i32_0 : i32, i32, i32
  }
  func.func @transform_17(%arg0: i32) -> (i32, i32, i32) {
    %c0_i32 = arith.constant 0 : i32
    %c0_i32_0 = arith.constant 0 : i32
    %c0_i32_1 = arith.constant 0 : i32
    return %arg0, %c0_i32, %c0_i32_0 : i32, i32, i32
  }
  func.func @transform_18(%arg0: i32) -> (i32, i32, i32) {
    %c0_i32 = arith.constant 0 : i32
    %c0_i32_0 = arith.constant 0 : i32
    %c0_i32_1 = arith.constant 0 : i32
    return %arg0, %c0_i32, %c0_i32_0 : i32, i32, i32
  }
  func.func @transform_19(%arg0: i32) -> (i32, i32, i32) {
    %c0_i32 = arith.constant 0 : i32
    %c0_i32_0 = arith.constant 0 : i32
    %c0_i32_1 = arith.constant 0 : i32
    return %arg0, %c0_i32, %c0_i32_0 : i32, i32, i32
  }
  func.func @transform_20(%arg0: i32) -> (i32, i32) {
    %c0_i32 = arith.constant 0 : i32
    %c0_i32_0 = arith.constant 0 : i32
    %c0_i32_1 = arith.constant 0 : i32
    return %c0_i32, %c0_i32_0 : i32, i32
  }
}

</mosaic_0001>

<llo_original>
// kernel: eq.1
$region0: #{eq.1}
  %s0 = inlined_call_operand.vmem [shape: s32[2,8], index: 0, kind: input, shape index: {}]
  %s1 = inlined_call_operand.vmem [shape: s32[16], index: 1, kind: output, shape index: {}]
  $region1: #{eq.1} parent=0
    #allocation0 [shape = 'u8[4096]{0}', space=vmem, size = 0x1000, scoped, tag = 'scoped mem for output reshape']
    #allocation1 [shape = 'u8[4096]{0}', space=vmem, size = 0x1000, scoped, tag = 'scoped mem for input reshape']
    %s3 = sshllo.u32 0, 2
    %v4 = vld [vmem:[%s0] sm:%s3]
    %5 = vst [vmem:[#allocation1] sm:%s3] %v4
    %v6 = vld [vmem:[#allocation1] sm:$0x1]
    %vm7 = vcmask 64512
    %8 = vst.msk [vmem:[#allocation0] sm:$0x1] %vm7, %v6
    %s9 = scalar_lea.vmem [#allocation1], 1
    %v10 = vld [vmem:[%s9] sm:$0x1]
    %11 = vrot.lane.b32.xlu0 %v10, 8
    %v12 = vpop.permute.xlu0 %11
    %vm13 = vcmask 130112
    %14 = vst.msk [vmem:[#allocation0] sm:$0x1] %vm13, %v12
    %s16 = sshllo.u32 0, 1
    %v18 = vld [vmem:[#allocation0] sm:%s16]
    %s19 = sshllo.u32 0, 1
    %20 = vst [vmem:[%s1] sm:%s19] %v18

// kernel: tile.19
$region0: #{tile.19}
  %s0 = inlined_call_operand.vmem [shape: f32[2,4,8], index: 0, kind: input, shape index: {}]
  %s1 = inlined_call_operand.vmem [shape: f32[2,32], index: 1, kind: output, shape index: {}]
  $region1: #{tile.19} parent=0
    #allocation0 [shape = 'u8[4096]{0}', space=vmem, size = 0x1000, scoped, tag = 'scoped mem for output reshape']
    #allocation1 [shape = 'u8[8192]{0}', space=vmem, size = 0x2000, scoped, tag = 'scoped mem for input reshape']
    %s3 = sshllo.u32 0, 4
    %s4 = scalar_lea.vmem %s0, 4
    %v5 = vld [vmem:[%s4] sm:%s3]
    %s6 = scalar_lea.vmem [#allocation1], 8
    %7 = vst [vmem:[%s6] sm:%s3] %v5
    %v8 = vld [vmem:[%s0] sm:%s3]
    %9 = vst [vmem:[#allocation1] sm:%s3] %v8
    %s10 = smov 3
    %v11 = vld [vmem:[#allocation1] ss:$8 sm:%s10]
    %vm12 = vcmask 64512
    %13 = vst.msk [vmem:[#allocation0] sm:$0x3] %vm12, %v11
    %s14 = scalar_lea.vmem [#allocation1], 3
    %s15 = smov 3
    %v16 = vld [vmem:[%s14] ss:$8 sm:%s15]
    %17 = vrot.lane.b32.xlu0 %v16, 24
    %v18 = vpop.permute.xlu0 %17
    %vm19 = vcmask 261312
    %20 = vst.msk [vmem:[#allocation0] sm:$0x3] %vm19, %v18
    %s21 = scalar_lea.vmem [#allocation1], 2
    %s22 = smov 3
    %v23 = vld [vmem:[%s21] ss:$8 sm:%s22]
    %24 = vrot.lane.b32.xlu0 %v23, 16
    %v25 = vpop.permute.xlu0 %24
    %vm26 = vcmask 195712
    %27 = vst.msk [vmem:[#allocation0] sm:$0x3] %vm26, %v25
    %s28 = scalar_lea.vmem [#allocation1], 1
    %s29 = smov 3
    %v30 = vld [vmem:[%s28] ss:$8 sm:%s29]
    %31 = vrot.lane.b32.xlu0 %v30, 8
    %v32 = vpop.permute.xlu0 %31
    %vm33 = vcmask 130112
    %34 = vst.msk [vmem:[#allocation0] sm:$0x3] %vm33, %v32
    %s36 = sshllo.u32 0, 2
    %v38 = vld [vmem:[#allocation0] sm:%s36]
    %s39 = sshllo.u32 0, 2
    %40 = vst [vmem:[%s1] sm:%s39] %v38

// kernel: sentence_transformer_forward.1
$region0: #{sentence_transformer_forward.1}
  #allocation0 [shape = 'u32[]', space=smem, size = 0x4, offset = 0x4, fixed_abs, tag = 'smem constant byte address 0x4 - core index']
  #allocation1 [shape = 'u32[144,128]{1,0:T(1,128)}', space=vmem, size = 0x12000, scoped, tag = 'internal scratch']
  #allocation2 [shape = 'f32[16,128]{1,0:T(8,128)}', space=vmem, size = 0x2000, scoped, tag = 'scratch operand']
  %s0 = inlined_call_operand.vmem [shape: bf16[16,64], index: 0, kind: input, shape index: {}]
  %s1 = inlined_call_operand.vmem [shape: f32[16,128], index: 1, kind: input, shape index: {}]
  %s2 = inlined_call_operand.vmem [shape: f32[1,128], index: 2, kind: input, shape index: {}]
  %s3 = inlined_call_operand.vmem [shape: f32[1,128], index: 3, kind: input, shape index: {}]
  %s4 = inlined_call_operand.vmem [shape: f32[2,32], index: 4, kind: input, shape index: {}]
  %s5 = inlined_call_operand.vmem [shape: f32[32,128], index: 5, kind: input, shape index: {}]
  %s6 = inlined_call_operand.vmem [shape: f32[2,16], index: 6, kind: input, shape index: {}]
  %s7 = inlined_call_operand.vmem [shape: bf16[64,128], index: 7, kind: input, shape index: {}]
  %s8 = inlined_call_operand.hbm [shape: bf16[2,128,384], index: 8, kind: input, shape index: {}]
  %s9 = inlined_call_operand.vmem [shape: f32[2,1,384], index: 9, kind: input, shape index: {}]
  %s10 = inlined_call_operand.hbm [shape: bf16[2,128,128], index: 10, kind: input, shape index: {}]
  %s11 = inlined_call_operand.vmem [shape: f32[2,1,128], index: 11, kind: input, shape index: {}]
  %s12 = inlined_call_operand.vmem [shape: f32[2,1,128], index: 12, kind: input, shape index: {}]
  %s13 = inlined_call_operand.vmem [shape: f32[2,1,128], index: 13, kind: input, shape index: {}]
  %s14 = inlined_call_operand.vmem [shape: bf16[2,128,256], index: 14, kind: input, shape index: {}]
  %s15 = inlined_call_operand.vmem [shape: f32[2,1,256], index: 15, kind: input, shape index: {}]
  %s16 = inlined_call_operand.hbm [shape: bf16[2,256,128], index: 16, kind: input, shape index: {}]
  %s17 = inlined_call_operand.vmem [shape: f32[2,1,128], index: 17, kind: input, shape index: {}]
  %s18 = inlined_call_operand.vmem [shape: f32[2,1,128], index: 18, kind: input, shape index: {}]
  %s19 = inlined_call_operand.vmem [shape: f32[2,1,128], index: 19, kind: input, shape index: {}]
  %s20 = inlined_call_operand.hbm [shape: f32[2,128], index: 20, kind: output, shape index: {}]
  %s21 = sld [smem:[#allocation0]]
  $region133: #{sentence_transformer_forward.1} parent=0
    _
  %s23 = ssub.s32 1, %s21
  %s24 = scalar_select 0, %s23, %s21
  $region1: #{sentence_transformer_forward.1} parent=0
    #allocation3 [shape = 'u8[196608]{0}', space=vmem, size = 0x30000, scoped, tag = 'input window, operand 8']
    #allocation4 [shape = 's32[2]{0}', space=sflag, size = 0x8, scoped, tag = 'scoped memory for sentence_transformer_forward.1']
    #allocation5 [shape = 's32[2]{0}', space=sflag, size = 0x8, scoped, tag = 'scoped memory for sentence_transformer_forward.1']
    #allocation6 [shape = 'u8[65536]{0}', space=vmem, size = 0x10000, scoped, tag = 'input window, operand 10']
    #allocation7 [shape = 's32[2]{0}', space=sflag, size = 0x8, scoped, tag = 'scoped memory for sentence_transformer_forward.1']
    #allocation8 [shape = 'u8[131072]{0}', space=vmem, size = 0x20000, scoped, tag = 'input window, operand 16']
    #allocation9 [shape = 'u8[1024]{0}', space=vmem, size = 0x400, scoped, tag = 'output window, operand 0, single buffered']
    %25 = vsyncpa [#allocation4], 0
    %s26 = scalar_lea.sflag [#allocation4], 1
    %27 = vsyncpa %s26, 0
    %28 = vsyncpa [#allocation7], 0
    %s29 = scalar_lea.sflag [#allocation7], 1
    %30 = vsyncpa %s29, 0
    %31 = vsyncpa [#allocation5], 0
    loop: start=0, step=1, limit=4
    $region2: #{sentence_transformer_forward.1} parent=1 // loop_pre_header
      _
    $region3: #{sentence_transformer_forward.1} parent=1 // loop_header
      %s33 = sphi 0, %s37
      %p34 = scmp.ge.s32.totalorder %s33, 4
      %s41 = sphi 0, %s41
      %s43 = sphi 0, %s41
      %s44 = sphi 0, %s43
      %s58 = sphi 0, %s44
      %s62 = sphi 0, %s62
      %s64 = sphi 0, %s62
      %s65 = sphi 0, %s64
      %s79 = sphi 0, %s65
      %s83 = sphi 0, %s83
      %s85 = sphi 0, %s83
      %s86 = sphi 0, %s85
      %s100 = sphi 0, %s86
      %s104 = sphi 0, %s104
      %s106 = sphi 0, %s104
      %s107 = sphi 0, %s106
      %s121 = sphi 0, %s107
      %s125 = sphi 0, %s125
      %s127 = sphi 0, %s125
      %s128 = sphi 0, %s127
      %s142 = sphi 0, %s128
      %s146 = sphi 0, %s146
      %s148 = sphi 0, %s146
      %s149 = sphi 0, %s148
      %s163 = sphi 0, %s149
      %s167 = sphi 0, %s167
      %s169 = sphi 0, %s167
      %s170 = sphi 0, %s169
      %s184 = sphi 0, %s170
      %s188 = sphi 0, %s188
      %s190 = sphi 0, %s188
      %s191 = sphi 0, %s190
      %s205 = sphi 0, %s191
      %s211 = sphi 0, %s213
      %s214 = sphi 0, %s211
      %s215 = sphi 0, %s214
      %s231 = sphi 0, %s215
      %s237 = sphi 0, %s239
      %s240 = sphi 0, %s237
      %s241 = sphi 0, %s240
      %s257 = sphi 0, %s241
      %s263 = sphi 0, %s265
      %s266 = sphi 0, %s263
      %s267 = sphi 0, %s266
      %s283 = sphi 0, %s267
      %s289 = sphi 0, %s291
      %s292 = sphi 0, %s289
      %s293 = sphi 0, %s292
      %s309 = sphi 0, %s293
      %s315 = sphi 0, %s317
      %s318 = sphi 0, %s315
      %s319 = sphi 0, %s318
      %s335 = sphi 0, %s319
      %s341 = sphi 0, %s343
      %s344 = sphi 0, %s341
      %s345 = sphi 0, %s344
      %s361 = sphi 0, %s345
      %s367 = sphi 0, %s369
      %s370 = sphi 0, %s367
      %s371 = sphi 0, %s370
      %s387 = sphi 0, %s371
      %s393 = sphi 0, %s395
      %s396 = sphi 0, %s393
      %s397 = sphi 0, %s396
      %s413 = sphi 0, %s397
      %s419 = sphi 0, %s421
      %s422 = sphi 0, %s419
      %s423 = sphi 0, %s422
      %s439 = sphi 0, %s423
      %s445 = sphi 0, %s447
      %s448 = sphi 0, %s445
      %s449 = sphi 0, %s448
      %s465 = sphi 0, %s449
      %s471 = sphi 0, %s473
      %s474 = sphi 0, %s471
      %s475 = sphi 0, %s474
      %s491 = sphi 0, %s475
      %s497 = sphi 0, %s499
      %s500 = sphi 0, %s497
      %s501 = sphi 0, %s500
      %s517 = sphi 0, %s501
      %s521 = sphi 0, %s521
      %s523 = sphi 0, %s521
      %s524 = sphi 0, %s523
      %s538 = sphi 0, %s524
    $region4: #{sentence_transformer_forward.1} parent=1 // loop_header_branch
      %36 = sbr.rel (%p34) target = $region8
    $region5: #{sentence_transformer_forward.1} parent=1 // loop_body
      %s38 = ssub.s32 %s33, 1
      %s39 = ssub.s32 %s33, 2
      %s40 = sadd.s32 %s33, 1
      %s42 = sadd.s32 %s41, 1
      %p45 = scmp.eq.s32.totalorder %s33, 1
      %p46 = scmp.ne.s32.totalorder %s41, %s43
      %p47 = scmp.eq.s32.totalorder %s33, 0
      %p48 = por %p46, %p47
      %p49 = scmp.ne.s32.totalorder %s41, %s43
      %p50 = scmp.eq.s32.totalorder %s38, 1
      %p51 = por %p49, %p50
      %p52 = scmp.ne.s32.totalorder %s43, %s44
      %p53 = scmp.eq.s32.totalorder %s38, 0
      %p54 = por %p52, %p53
      %p55 = scmp.ne.s32.totalorder %s43, %s44
      %p56 = scmp.eq.s32.totalorder %s39, 1
      %p57 = por %p55, %p56
      %p59 = scmp.ne.s32.totalorder %s44, %s58
      %p60 = scmp.eq.s32.totalorder %s39, 0
      %p61 = por %p59, %p60
      %s63 = sadd.s32 %s62, 1
      %p66 = scmp.eq.s32.totalorder %s33, 1
      %p67 = scmp.ne.s32.totalorder %s62, %s64
      %p68 = scmp.eq.s32.totalorder %s33, 0
      %p69 = por %p67, %p68
      %p70 = scmp.ne.s32.totalorder %s62, %s64
      %p71 = scmp.eq.s32.totalorder %s38, 1
      %p72 = por %p70, %p71
      %p73 = scmp.ne.s32.totalorder %s64, %s65
      %p74 = scmp.eq.s32.totalorder %s38, 0
      %p75 = por %p73, %p74
      %p76 = scmp.ne.s32.totalorder %s64, %s65
      %p77 = scmp.eq.s32.totalorder %s39, 1
      %p78 = por %p76, %p77
      %p80 = scmp.ne.s32.totalorder %s65, %s79
      %p81 = scmp.eq.s32.totalorder %s39, 0
      %p82 = por %p80, %p81
      %s84 = sadd.s32 %s83, 1
      %p87 = scmp.eq.s32.totalorder %s33, 1
      %p88 = scmp.ne.s32.totalorder %s83, %s85
      %p89 = scmp.eq.s32.totalorder %s33, 0
      %p90 = por %p88, %p89
      %p91 = scmp.ne.s32.totalorder %s83, %s85
      %p92 = scmp.eq.s32.totalorder %s38, 1
      %p93 = por %p91, %p92
      %p94 = scmp.ne.s32.totalorder %s85, %s86
      %p95 = scmp.eq.s32.totalorder %s38, 0
      %p96 = por %p94, %p95
      %p97 = scmp.ne.s32.totalorder %s85, %s86
      %p98 = scmp.eq.s32.totalorder %s39, 1
      %p99 = por %p97, %p98
      %p101 = scmp.ne.s32.totalorder %s86, %s100
      %p102 = scmp.eq.s32.totalorder %s39, 0
      %p103 = por %p101, %p102
      %s105 = sadd.s32 %s104, 1
      %p108 = scmp.eq.s32.totalorder %s33, 1
      %p109 = scmp.ne.s32.totalorder %s104, %s106
      %p110 = scmp.eq.s32.totalorder %s33, 0
      %p111 = por %p109, %p110
      %p112 = scmp.ne.s32.totalorder %s104, %s106
      %p113 = scmp.eq.s32.totalorder %s38, 1
      %p114 = por %p112, %p113
      %p115 = scmp.ne.s32.totalorder %s106, %s107
      %p116 = scmp.eq.s32.totalorder %s38, 0
      %p117 = por %p115, %p116
      %p118 = scmp.ne.s32.totalorder %s106, %s107
      %p119 = scmp.eq.s32.totalorder %s39, 1
      %p120 = por %p118, %p119
      %p122 = scmp.ne.s32.totalorder %s107, %s121
      %p123 = scmp.eq.s32.totalorder %s39, 0
      %p124 = por %p122, %p123
      %s126 = sadd.s32 %s125, 1
      %p129 = scmp.eq.s32.totalorder %s33, 1
      %p130 = scmp.ne.s32.totalorder %s125, %s127
      %p131 = scmp.eq.s32.totalorder %s33, 0
      %p132 = por %p130, %p131
      %p133 = scmp.ne.s32.totalorder %s125, %s127
      %p134 = scmp.eq.s32.totalorder %s38, 1
      %p135 = por %p133, %p134
      %p136 = scmp.ne.s32.totalorder %s127, %s128
      %p137 = scmp.eq.s32.totalorder %s38, 0
      %p138 = por %p136, %p137
      %p139 = scmp.ne.s32.totalorder %s127, %s128
      %p140 = scmp.eq.s32.totalorder %s39, 1
      %p141 = por %p139, %p140
      %p143 = scmp.ne.s32.totalorder %s128, %s142
      %p144 = scmp.eq.s32.totalorder %s39, 0
      %p145 = por %p143, %p144
      %s147 = sadd.s32 %s146, 1
      %p150 = scmp.eq.s32.totalorder %s33, 1
      %p151 = scmp.ne.s32.totalorder %s146, %s148
      %p152 = scmp.eq.s32.totalorder %s33, 0
      %p153 = por %p151, %p152
      %p154 = scmp.ne.s32.totalorder %s146, %s148
      %p155 = scmp.eq.s32.totalorder %s38, 1
      %p156 = por %p154, %p155
      %p157 = scmp.ne.s32.totalorder %s148, %s149
      %p158 = scmp.eq.s32.totalorder %s38, 0
      %p159 = por %p157, %p158
      %p160 = scmp.ne.s32.totalorder %s148, %s149
      %p161 = scmp.eq.s32.totalorder %s39, 1
      %p162 = por %p160, %p161
      %p164 = scmp.ne.s32.totalorder %s149, %s163
      %p165 = scmp.eq.s32.totalorder %s39, 0
      %p166 = por %p164, %p165
      %s168 = sadd.s32 %s167, 1
      %p171 = scmp.eq.s32.totalorder %s33, 1
      %p172 = scmp.ne.s32.totalorder %s167, %s169
      %p173 = scmp.eq.s32.totalorder %s33, 0
      %p174 = por %p172, %p173
      %p175 = scmp.ne.s32.totalorder %s167, %s169
      %p176 = scmp.eq.s32.totalorder %s38, 1
      %p177 = por %p175, %p176
      %p178 = scmp.ne.s32.totalorder %s169, %s170
      %p179 = scmp.eq.s32.totalorder %s38, 0
      %p180 = por %p178, %p179
      %p181 = scmp.ne.s32.totalorder %s169, %s170
      %p182 = scmp.eq.s32.totalorder %s39, 1
      %p183 = por %p181, %p182
      %p185 = scmp.ne.s32.totalorder %s170, %s184
      %p186 = scmp.eq.s32.totalorder %s39, 0
      %p187 = por %p185, %p186
      %s189 = sadd.s32 %s188, 1
      %p192 = scmp.eq.s32.totalorder %s33, 1
      %p193 = scmp.ne.s32.totalorder %s188, %s190
      %p194 = scmp.eq.s32.totalorder %s33, 0
      %p195 = por %p193, %p194
      %p196 = scmp.ne.s32.totalorder %s188, %s190
      %p197 = scmp.eq.s32.totalorder %s38, 1
      %p198 = por %p196, %p197
      %p199 = scmp.ne.s32.totalorder %s190, %s191
      %p200 = scmp.eq.s32.totalorder %s38, 0
      %p201 = por %p199, %p200
      %p202 = scmp.ne.s32.totalorder %s190, %s191
      %p203 = scmp.eq.s32.totalorder %s39, 1
      %p204 = por %p202, %p203
      %p206 = scmp.ne.s32.totalorder %s191, %s205
      %p207 = scmp.eq.s32.totalorder %s39, 0
      %p208 = por %p206, %p207
      %s209 = ssub.s32 %s33, %s40
      %p210 = scmp.eq.s32.totalorder %s209, 0
      %s212 = sadd.s32 %s211, 1
      %s213 = scalar_select %p210, %s211, %s212
      %p216 = pneg %p210
      %p217 = scmp.eq.s32.totalorder %s33, 1
      %p218 = por %p216, %p217
      %p219 = scmp.ne.s32.totalorder %s211, %s214
      %p220 = scmp.eq.s32.totalorder %s33, 0
      %p221 = por %p219, %p220
      %p222 = scmp.ne.s32.totalorder %s211, %s214
      %p223 = scmp.eq.s32.totalorder %s38, 1
      %p224 = por %p222, %p223
      %p225 = scmp.ne.s32.totalorder %s214, %s215
      %p226 = scmp.eq.s32.totalorder %s38, 0
      %p227 = por %p225, %p226
      %p228 = scmp.ne.s32.totalorder %s214, %s215
      %p229 = scmp.eq.s32.totalorder %s39, 1
      %p230 = por %p228, %p229
      %p232 = scmp.ne.s32.totalorder %s215, %s231
      %p233 = scmp.eq.s32.totalorder %s39, 0
      %p234 = por %p232, %p233
      %s235 = ssub.s32 %s33, %s40
      %p236 = scmp.eq.s32.totalorder %s235, 0
      %s238 = sadd.s32 %s237, 1
      %s239 = scalar_select %p236, %s237, %s238
      %p242 = pneg %p236
      %p243 = scmp.eq.s32.totalorder %s33, 1
      %p244 = por %p242, %p243
      %p245 = scmp.ne.s32.totalorder %s237, %s240
      %p246 = scmp.eq.s32.totalorder %s33, 0
      %p247 = por %p245, %p246
      %p248 = scmp.ne.s32.totalorder %s237, %s240
      %p249 = scmp.eq.s32.totalorder %s38, 1
      %p250 = por %p248, %p249
      %p251 = scmp.ne.s32.totalorder %s240, %s241
      %p252 = scmp.eq.s32.totalorder %s38, 0
      %p253 = por %p251, %p252
      %p254 = scmp.ne.s32.totalorder %s240, %s241
      %p255 = scmp.eq.s32.totalorder %s39, 1
      %p256 = por %p254, %p255
      %p258 = scmp.ne.s32.totalorder %s241, %s257
      %p259 = scmp.eq.s32.totalorder %s39, 0
      %p260 = por %p258, %p259
      %s261 = ssub.s32 %s33, %s40
      %p262 = scmp.eq.s32.totalorder %s261, 0
      %s264 = sadd.s32 %s263, 1
      %s265 = scalar_select %p262, %s263, %s264
      %p268 = pneg %p262
      %p269 = scmp.eq.s32.totalorder %s33, 1
      %p270 = por %p268, %p269
      %p271 = scmp.ne.s32.totalorder %s263, %s266
      %p272 = scmp.eq.s32.totalorder %s33, 0
      %p273 = por %p271, %p272
      %p274 = scmp.ne.s32.totalorder %s263, %s266
      %p275 = scmp.eq.s32.totalorder %s38, 1
      %p276 = por %p274, %p275
      %p277 = scmp.ne.s32.totalorder %s266, %s267
      %p278 = scmp.eq.s32.totalorder %s38, 0
      %p279 = por %p277, %p278
      %p280 = scmp.ne.s32.totalorder %s266, %s267
      %p281 = scmp.eq.s32.totalorder %s39, 1
      %p282 = por %p280, %p281
      %p284 = scmp.ne.s32.totalorder %s267, %s283
      %p285 = scmp.eq.s32.totalorder %s39, 0
      %p286 = por %p284, %p285
      %s287 = ssub.s32 %s33, %s40
      %p288 = scmp.eq.s32.totalorder %s287, 0
      %s290 = sadd.s32 %s289, 1
      %s291 = scalar_select %p288, %s289, %s290
      %p294 = pneg %p288
      %p295 = scmp.eq.s32.totalorder %s33, 1
      %p296 = por %p294, %p295
      %p297 = scmp.ne.s32.totalorder %s289, %s292
      %p298 = scmp.eq.s32.totalorder %s33, 0
      %p299 = por %p297, %p298
      %p300 = scmp.ne.s32.totalorder %s289, %s292
      %p301 = scmp.eq.s32.totalorder %s38, 1
      %p302 = por %p300, %p301
      %p303 = scmp.ne.s32.totalorder %s292, %s293
      %p304 = scmp.eq.s32.totalorder %s38, 0
      %p305 = por %p303, %p304
      %p306 = scmp.ne.s32.totalorder %s292, %s293
      %p307 = scmp.eq.s32.totalorder %s39, 1
      %p308 = por %p306, %p307
      %p310 = scmp.ne.s32.totalorder %s293, %s309
      %p311 = scmp.eq.s32.totalorder %s39, 0
      %p312 = por %p310, %p311
      %s313 = ssub.s32 %s33, %s40
      %p314 = scmp.eq.s32.totalorder %s313, 0
      %s316 = sadd.s32 %s315, 1
      %s317 = scalar_select %p314, %s315, %s316
      %p320 = pneg %p314
      %p321 = scmp.eq.s32.totalorder %s33, 1
      %p322 = por %p320, %p321
      %p323 = scmp.ne.s32.totalorder %s315, %s318
      %p324 = scmp.eq.s32.totalorder %s33, 0
      %p325 = por %p323, %p324
      %p326 = scmp.ne.s32.totalorder %s315, %s318
      %p327 = scmp.eq.s32.totalorder %s38, 1
      %p328 = por %p326, %p327
      %p329 = scmp.ne.s32.totalorder %s318, %s319
      %p330 = scmp.eq.s32.totalorder %s38, 0
      %p331 = por %p329, %p330
      %p332 = scmp.ne.s32.totalorder %s318, %s319
      %p333 = scmp.eq.s32.totalorder %s39, 1
      %p334 = por %p332, %p333
      %p336 = scmp.ne.s32.totalorder %s319, %s335
      %p337 = scmp.eq.s32.totalorder %s39, 0
      %p338 = por %p336, %p337
      %s339 = ssub.s32 %s33, %s40
      %p340 = scmp.eq.s32.totalorder %s339, 0
      %s342 = sadd.s32 %s341, 1
      %s343 = scalar_select %p340, %s341, %s342
      %p346 = pneg %p340
      %p347 = scmp.eq.s32.totalorder %s33, 1
      %p348 = por %p346, %p347
      %p349 = scmp.ne.s32.totalorder %s341, %s344
      %p350 = scmp.eq.s32.totalorder %s33, 0
      %p351 = por %p349, %p350
      %p352 = scmp.ne.s32.totalorder %s341, %s344
      %p353 = scmp.eq.s32.totalorder %s38, 1
      %p354 = por %p352, %p353
      %p355 = scmp.ne.s32.totalorder %s344, %s345
      %p356 = scmp.eq.s32.totalorder %s38, 0
      %p357 = por %p355, %p356
      %p358 = scmp.ne.s32.totalorder %s344, %s345
      %p359 = scmp.eq.s32.totalorder %s39, 1
      %p360 = por %p358, %p359
      %p362 = scmp.ne.s32.totalorder %s345, %s361
      %p363 = scmp.eq.s32.totalorder %s39, 0
      %p364 = por %p362, %p363
      %s365 = ssub.s32 %s33, %s40
      %p366 = scmp.eq.s32.totalorder %s365, 0
      %s368 = sadd.s32 %s367, 1
      %s369 = scalar_select %p366, %s367, %s368
      %p372 = pneg %p366
      %p373 = scmp.eq.s32.totalorder %s33, 1
      %p374 = por %p372, %p373
      %p375 = scmp.ne.s32.totalorder %s367, %s370
      %p376 = scmp.eq.s32.totalorder %s33, 0
      %p377 = por %p375, %p376
      %p378 = scmp.ne.s32.totalorder %s367, %s370
      %p379 = scmp.eq.s32.totalorder %s38, 1
      %p380 = por %p378, %p379
      %p381 = scmp.ne.s32.totalorder %s370, %s371
      %p382 = scmp.eq.s32.totalorder %s38, 0
      %p383 = por %p381, %p382
      %p384 = scmp.ne.s32.totalorder %s370, %s371
      %p385 = scmp.eq.s32.totalorder %s39, 1
      %p386 = por %p384, %p385
      %p388 = scmp.ne.s32.totalorder %s371, %s387
      %p389 = scmp.eq.s32.totalorder %s39, 0
      %p390 = por %p388, %p389
      %s391 = ssub.s32 %s33, %s40
      %p392 = scmp.eq.s32.totalorder %s391, 0
      %s394 = sadd.s32 %s393, 1
      %s395 = scalar_select %p392, %s393, %s394
      %p398 = pneg %p392
      %p399 = scmp.eq.s32.totalorder %s33, 1
      %p400 = por %p398, %p399
      %p401 = scmp.ne.s32.totalorder %s393, %s396
      %p402 = scmp.eq.s32.totalorder %s33, 0
      %p403 = por %p401, %p402
      %p404 = scmp.ne.s32.totalorder %s393, %s396
      %p405 = scmp.eq.s32.totalorder %s38, 1
      %p406 = por %p404, %p405
      %p407 = scmp.ne.s32.totalorder %s396, %s397
      %p408 = scmp.eq.s32.totalorder %s38, 0
      %p409 = por %p407, %p408
      %p410 = scmp.ne.s32.totalorder %s396, %s397
      %p411 = scmp.eq.s32.totalorder %s39, 1
      %p412 = por %p410, %p411
      %p414 = scmp.ne.s32.totalorder %s397, %s413
      %p415 = scmp.eq.s32.totalorder %s39, 0
      %p416 = por %p414, %p415
      %s417 = ssub.s32 %s33, %s40
      %p418 = scmp.eq.s32.totalorder %s417, 0
      %s420 = sadd.s32 %s419, 1
      %s421 = scalar_select %p418, %s419, %s420
      %p424 = pneg %p418
      %p425 = scmp.eq.s32.totalorder %s33, 1
      %p426 = por %p424, %p425
      %p427 = scmp.ne.s32.totalorder %s419, %s422
      %p428 = scmp.eq.s32.totalorder %s33, 0
      %p429 = por %p427, %p428
      %p430 = scmp.ne.s32.totalorder %s419, %s422
      %p431 = scmp.eq.s32.totalorder %s38, 1
      %p432 = por %p430, %p431
      %p433 = scmp.ne.s32.totalorder %s422, %s423
      %p434 = scmp.eq.s32.totalorder %s38, 0
      %p435 = por %p433, %p434
      %p436 = scmp.ne.s32.totalorder %s422, %s423
      %p437 = scmp.eq.s32.totalorder %s39, 1
      %p438 = por %p436, %p437
      %p440 = scmp.ne.s32.totalorder %s423, %s439
      %p441 = scmp.eq.s32.totalorder %s39, 0
      %p442 = por %p440, %p441
      %s443 = ssub.s32 %s33, %s40
      %p444 = scmp.eq.s32.totalorder %s443, 0
      %s446 = sadd.s32 %s445, 1
      %s447 = scalar_select %p444, %s445, %s446
      %p450 = pneg %p444
      %p451 = scmp.eq.s32.totalorder %s33, 1
      %p452 = por %p450, %p451
      %p453 = scmp.ne.s32.totalorder %s445, %s448
      %p454 = scmp.eq.s32.totalorder %s33, 0
      %p455 = por %p453, %p454
      %p456 = scmp.ne.s32.totalorder %s445, %s448
      %p457 = scmp.eq.s32.totalorder %s38, 1
      %p458 = por %p456, %p457
      %p459 = scmp.ne.s32.totalorder %s448, %s449
      %p460 = scmp.eq.s32.totalorder %s38, 0
      %p461 = por %p459, %p460
      %p462 = scmp.ne.s32.totalorder %s448, %s449
      %p463 = scmp.eq.s32.totalorder %s39, 1
      %p464 = por %p462, %p463
      %p466 = scmp.ne.s32.totalorder %s449, %s465
      %p467 = scmp.eq.s32.totalorder %s39, 0
      %p468 = por %p466, %p467
      %s469 = ssub.s32 %s33, %s40
      %p470 = scmp.eq.s32.totalorder %s469, 0
      %s472 = sadd.s32 %s471, 1
      %s473 = scalar_select %p470, %s471, %s472
      %p476 = pneg %p470
      %p477 = scmp.eq.s32.totalorder %s33, 1
      %p478 = por %p476, %p477
      %p479 = scmp.ne.s32.totalorder %s471, %s474
      %p480 = scmp.eq.s32.totalorder %s33, 0
      %p481 = por %p479, %p480
      %p482 = scmp.ne.s32.totalorder %s471, %s474
      %p483 = scmp.eq.s32.totalorder %s38, 1
      %p484 = por %p482, %p483
      %p485 = scmp.ne.s32.totalorder %s474, %s475
      %p486 = scmp.eq.s32.totalorder %s38, 0
      %p487 = por %p485, %p486
      %p488 = scmp.ne.s32.totalorder %s474, %s475
      %p489 = scmp.eq.s32.totalorder %s39, 1
      %p490 = por %p488, %p489
      %p492 = scmp.ne.s32.totalorder %s475, %s491
      %p493 = scmp.eq.s32.totalorder %s39, 0
      %p494 = por %p492, %p493
      %s495 = ssub.s32 %s33, %s40
      %p496 = scmp.eq.s32.totalorder %s495, 0
      %s498 = sadd.s32 %s497, 1
      %s499 = scalar_select %p496, %s497, %s498
      %p502 = pneg %p496
      %p503 = scmp.eq.s32.totalorder %s33, 1
      %p504 = por %p502, %p503
      %p505 = scmp.ne.s32.totalorder %s497, %s500
      %p506 = scmp.eq.s32.totalorder %s33, 0
      %p507 = por %p505, %p506
      %p508 = scmp.ne.s32.totalorder %s497, %s500
      %p509 = scmp.eq.s32.totalorder %s38, 1
      %p510 = por %p508, %p509
      %p511 = scmp.ne.s32.totalorder %s500, %s501
      %p512 = scmp.eq.s32.totalorder %s38, 0
      %p513 = por %p511, %p512
      %p514 = scmp.ne.s32.totalorder %s500, %s501
      %p515 = scmp.eq.s32.totalorder %s39, 1
      %p516 = por %p514, %p515
      %p518 = scmp.ne.s32.totalorder %s501, %s517
      %p519 = scmp.eq.s32.totalorder %s39, 0
      %p520 = por %p518, %p519
      %s522 = sadd.s32 %s521, 1
      %p525 = scmp.eq.s32.totalorder %s33, 1
      %p526 = scmp.ne.s32.totalorder %s521, %s523
      %p527 = scmp.eq.s32.totalorder %s33, 0
      %p528 = por %p526, %p527
      %p529 = scmp.ne.s32.totalorder %s521, %s523
      %p530 = scmp.eq.s32.totalorder %s38, 1
      %p531 = por %p529, %p530
      %p532 = scmp.ne.s32.totalorder %s523, %s524
      %p533 = scmp.eq.s32.totalorder %s38, 0
      %p534 = por %p532, %p533
      %p535 = scmp.ne.s32.totalorder %s523, %s524
      %p536 = scmp.eq.s32.totalorder %s39, 1
      %p537 = por %p535, %p536
      %p539 = scmp.ne.s32.totalorder %s524, %s538
      %p540 = scmp.eq.s32.totalorder %s39, 0
      %p541 = por %p539, %p540
      %p542 = scmp.le.s32.totalorder 1, %s33
      %p543 = scmp.lt.s32.totalorder %s33, 3
      %p544 = pnand %p542, %p543
      %p545 = pneg %p544
      // Predicated region
      $region9: #{sentence_transformer_forward.1} parent=5 // pred_check
        _
      $region10: #{sentence_transformer_forward.1} parent=5 // pred_check_branch
        %547 = sbr.rel (%p544) target = $region12
      $region11: #{sentence_transformer_forward.1} parent=5 // pred_region
        %s548 = ssub.s32 %s33, 1
        // Predicated region
        $region13: #{sentence_transformer_forward.1} parent=11 // pred_check
          %p549 = pneg %p54
        $region14: #{sentence_transformer_forward.1} parent=11 // pred_check_branch
          %551 = sbr.rel (%p549) target = $region16
        $region15: #{sentence_transformer_forward.1} parent=11 // pred_region
          _
        $region16: #{sentence_transformer_forward.1} parent=11 // pred_fallthru
          _
        // Predicated region
        $region17: #{sentence_transformer_forward.1} parent=11 // pred_check
          %p552 = pneg %p75
        $region18: #{sentence_transformer_forward.1} parent=11 // pred_check_branch
          %554 = sbr.rel (%p552) target = $region20
        $region19: #{sentence_transformer_forward.1} parent=11 // pred_region
          _
        $region20: #{sentence_transformer_forward.1} parent=11 // pred_fallthru
          _
        // Predicated region
        $region21: #{sentence_transformer_forward.1} parent=11 // pred_check
          %p555 = pneg %p96
        $region22: #{sentence_transformer_forward.1} parent=11 // pred_check_branch
          %557 = sbr.rel (%p555) target = $region24
        $region23: #{sentence_transformer_forward.1} parent=11 // pred_region
          _
        $region24: #{sentence_transformer_forward.1} parent=11 // pred_fallthru
          _
        // Predicated region
        $region25: #{sentence_transformer_forward.1} parent=11 // pred_check
          %p558 = pneg %p117
        $region26: #{sentence_transformer_forward.1} parent=11 // pred_check_branch
          %560 = sbr.rel (%p558) target = $region28
        $region27: #{sentence_transformer_forward.1} parent=11 // pred_region
          _
        $region28: #{sentence_transformer_forward.1} parent=11 // pred_fallthru
          _
        // Predicated region
        $region29: #{sentence_transformer_forward.1} parent=11 // pred_check
          %p561 = pneg %p138
        $region30: #{sentence_transformer_forward.1} parent=11 // pred_check_branch
          %563 = sbr.rel (%p561) target = $region32
        $region31: #{sentence_transformer_forward.1} parent=11 // pred_region
          _
        $region32: #{sentence_transformer_forward.1} parent=11 // pred_fallthru
          _
        // Predicated region
        $region33: #{sentence_transformer_forward.1} parent=11 // pred_check
          %p564 = pneg %p159
        $region34: #{sentence_transformer_forward.1} parent=11 // pred_check_branch
          %566 = sbr.rel (%p564) target = $region36
        $region35: #{sentence_transformer_forward.1} parent=11 // pred_region
          _
        $region36: #{sentence_transformer_forward.1} parent=11 // pred_fallthru
          _
        // Predicated region
        $region37: #{sentence_transformer_forward.1} parent=11 // pred_check
          %p567 = pneg %p180
        $region38: #{sentence_transformer_forward.1} parent=11 // pred_check_branch
          %569 = sbr.rel (%p567) target = $region40
        $region39: #{sentence_transformer_forward.1} parent=11 // pred_region
          _
        $region40: #{sentence_transformer_forward.1} parent=11 // pred_fallthru
          _
        // Predicated region
        $region41: #{sentence_transformer_forward.1} parent=11 // pred_check
          %p570 = pneg %p201
        $region42: #{sentence_transformer_forward.1} parent=11 // pred_check_branch
          %572 = sbr.rel (%p570) target = $region44
        $region43: #{sentence_transformer_forward.1} parent=11 // pred_region
          _
        $region44: #{sentence_transformer_forward.1} parent=11 // pred_fallthru
          _
      $region12: #{sentence_transformer_forward.1} parent=5 // pred_fallthru
        _
      %p573 = scmp.lt.s32.totalorder %s33, 2
      // Predicated region
      $region45: #{sentence_transformer_forward.1} parent=5 // pred_check
        %p574 = pneg %p573
      $region46: #{sentence_transformer_forward.1} parent=5 // pred_check_branch
        %576 = sbr.rel (%p574) target = $region48
      $region47: #{sentence_transformer_forward.1} parent=5 // pred_region
        // Predicated region
        $region49: #{sentence_transformer_forward.1} parent=47 // pred_check
          %p577 = pneg %p221
        $region50: #{sentence_transformer_forward.1} parent=47 // pred_check_branch
          %579 = sbr.rel (%p577) target = $region52
        $region51: #{sentence_transformer_forward.1} parent=47 // pred_region
          %s580 = sand.u32 %s211, 1
          %s581 = scalar_lea.sflag [#allocation4], %s580
          %s582 = sand.u32 %s211, 1
          %s583 = smul.addr %s582, 192
          %s584 = scalar_lea.vmem [#allocation3], %s583
          %s586 = ssub.s32 3072, 3072
          %587 = vsyncadd %s581, %s586
          %s588 = smul.addr %s33, 48
          %s589 = smul.addr %s588, 64
          %s590 = scalar_lea.hbm %s8, %s589
          %s591 = sshll.u32 %s584, 4
          %s592 = int_to_ptr.vmem [resolvable:$true] %s591
          %597 = dma.hbm_to_vmem [thread:$0]  %s590, 3072, %s592, %s581, 192, 192, 12
        $region52: #{sentence_transformer_forward.1} parent=47 // pred_fallthru
          _
        // Predicated region
        $region53: #{sentence_transformer_forward.1} parent=47 // pred_check
          %p598 = pneg %p247
        $region54: #{sentence_transformer_forward.1} parent=47 // pred_check_branch
          %600 = sbr.rel (%p598) target = $region56
        $region55: #{sentence_transformer_forward.1} parent=47 // pred_region
          %p601 = scmp.lt.s32.totalorder %s33, 1
          %s602 = scalar_select %p601, %s33, 1
          %s603 = smul.addr %s602, 3
          %s604 = scalar_lea.vmem %s9, %s603
        $region56: #{sentence_transformer_forward.1} parent=47 // pred_fallthru
          _
        // Predicated region
        $region57: #{sentence_transformer_forward.1} parent=47 // pred_check
          %p605 = pneg %p273
        $region58: #{sentence_transformer_forward.1} parent=47 // pred_check_branch
          %607 = sbr.rel (%p605) target = $region60
        $region59: #{sentence_transformer_forward.1} parent=47 // pred_region
          %s608 = sand.u32 %s33, 1
          %s609 = scalar_lea.sflag [#allocation7], %s608
          %s610 = sand.u32 %s263, 1
          %s611 = smul.addr %s610, 64
          %s612 = scalar_lea.vmem [#allocation6], %s611
          %s614 = ssub.s32 1024, 1024
          %615 = vsyncadd %s609, %s614
          %s616 = smul.addr %s33, 16
          %s617 = smul.addr %s616, 64
          %s618 = scalar_lea.hbm %s10, %s617
          %s619 = sshll.u32 %s612, 4
          %s620 = int_to_ptr.vmem [resolvable:$true] %s619
          %625 = dma.hbm_to_vmem [thread:$0]  %s618, 1024, %s620, %s609, 64, 64, 4
        $region60: #{sentence_transformer_forward.1} parent=47 // pred_fallthru
          _
        // Predicated region
        $region61: #{sentence_transformer_forward.1} parent=47 // pred_check
          %p626 = pneg %p299
        $region62: #{sentence_transformer_forward.1} parent=47 // pred_check_branch
          %628 = sbr.rel (%p626) target = $region64
        $region63: #{sentence_transformer_forward.1} parent=47 // pred_region
          %p629 = scmp.lt.s32.totalorder %s33, 1
          %s630 = scalar_select %p629, %s33, 1
          %s631 = scalar_lea.vmem %s11, %s630
        $region64: #{sentence_transformer_forward.1} parent=47 // pred_fallthru
          _
        // Predicated region
        $region65: #{sentence_transformer_forward.1} parent=47 // pred_check
          %p632 = pneg %p325
        $region66: #{sentence_transformer_forward.1} parent=47 // pred_check_branch
          %634 = sbr.rel (%p632) target = $region68
        $region67: #{sentence_transformer_forward.1} parent=47 // pred_region
          %p635 = scmp.lt.s32.totalorder %s33, 1
          %s636 = scalar_select %p635, %s33, 1
          %s637 = scalar_lea.vmem %s12, %s636
        $region68: #{sentence_transformer_forward.1} parent=47 // pred_fallthru
          _
        // Predicated region
        $region69: #{sentence_transformer_forward.1} parent=47 // pred_check
          %p638 = pneg %p351
        $region70: #{sentence_transformer_forward.1} parent=47 // pred_check_branch
          %640 = sbr.rel (%p638) target = $region72
        $region71: #{sentence_transformer_forward.1} parent=47 // pred_region
          %p641 = scmp.lt.s32.totalorder %s33, 1
          %s642 = scalar_select %p641, %s33, 1
          %s643 = scalar_lea.vmem %s13, %s642
        $region72: #{sentence_transformer_forward.1} parent=47 // pred_fallthru
          _
        // Predicated region
        $region73: #{sentence_transformer_forward.1} parent=47 // pred_check
          %p644 = pneg %p377
        $region74: #{sentence_transformer_forward.1} parent=47 // pred_check_branch
          %646 = sbr.rel (%p644) target = $region76
        $region75: #{sentence_transformer_forward.1} parent=47 // pred_region
          %p647 = scmp.lt.s32.totalorder %s33, 1
          %s648 = scalar_select %p647, %s33, 1
          %s649 = smul.addr %s648, 32
          %s650 = smul.addr %s649, 4
          %s651 = scalar_lea.vmem %s14, %s650
        $region76: #{sentence_transformer_forward.1} parent=47 // pred_fallthru
          _
        // Predicated region
        $region77: #{sentence_transformer_forward.1} parent=47 // pred_check
          %p652 = pneg %p403
        $region78: #{sentence_transformer_forward.1} parent=47 // pred_check_branch
          %654 = sbr.rel (%p652) target = $region80
        $region79: #{sentence_transformer_forward.1} parent=47 // pred_region
          %p655 = scmp.lt.s32.totalorder %s33, 1
          %s656 = scalar_select %p655, %s33, 1
          %s657 = smul.addr %s656, 2
          %s658 = scalar_lea.vmem %s15, %s657
        $region80: #{sentence_transformer_forward.1} parent=47 // pred_fallthru
          _
        // Predicated region
        $region81: #{sentence_transformer_forward.1} parent=47 // pred_check
          %p659 = pneg %p429
        $region82: #{sentence_transformer_forward.1} parent=47 // pred_check_branch
          %661 = sbr.rel (%p659) target = $region84
        $region83: #{sentence_transformer_forward.1} parent=47 // pred_region
          %s662 = sand.u32 %s33, 1
          %s663 = scalar_lea.sflag [#allocation7], %s662
          %s664 = sand.u32 %s419, 1
          %s665 = smul.addr %s664, 128
          %s666 = scalar_lea.vmem [#allocation8], %s665
          %s668 = ssub.s32 2048, 2048
          %669 = vsyncadd %s663, %s668
          %s670 = smul.addr %s33, 32
          %s671 = smul.addr %s670, 64
          %s672 = scalar_lea.hbm %s16, %s671
          %s673 = sshll.u32 %s666, 4
          %s674 = int_to_ptr.vmem [resolvable:$true] %s673
          %679 = dma.hbm_to_vmem [thread:$0]  %s672, 2048, %s674, %s663, 64, 64, 4
        $region84: #{sentence_transformer_forward.1} parent=47 // pred_fallthru
          _
        // Predicated region
        $region85: #{sentence_transformer_forward.1} parent=47 // pred_check
          %p680 = pneg %p455
        $region86: #{sentence_transformer_forward.1} parent=47 // pred_check_branch
          %682 = sbr.rel (%p680) target = $region88
        $region87: #{sentence_transformer_forward.1} parent=47 // pred_region
          %p683 = scmp.lt.s32.totalorder %s33, 1
          %s684 = scalar_select %p683, %s33, 1
          %s685 = scalar_lea.vmem %s17, %s684
        $region88: #{sentence_transformer_forward.1} parent=47 // pred_fallthru
          _
        // Predicated region
        $region89: #{sentence_transformer_forward.1} parent=47 // pred_check
          %p686 = pneg %p481
        $region90: #{sentence_transformer_forward.1} parent=47 // pred_check_branch
          %688 = sbr.rel (%p686) target = $region92
        $region91: #{sentence_transformer_forward.1} parent=47 // pred_region
          %p689 = scmp.lt.s32.totalorder %s33, 1
          %s690 = scalar_select %p689, %s33, 1
          %s691 = scalar_lea.vmem %s18, %s690
        $region92: #{sentence_transformer_forward.1} parent=47 // pred_fallthru
          _
        // Predicated region
        $region93: #{sentence_transformer_forward.1} parent=47 // pred_check
          %p692 = pneg %p507
        $region94: #{sentence_transformer_forward.1} parent=47 // pred_check_branch
          %694 = sbr.rel (%p692) target = $region96
        $region95: #{sentence_transformer_forward.1} parent=47 // pred_region
          %p695 = scmp.lt.s32.totalorder %s33, 1
          %s696 = scalar_select %p695, %s33, 1
          %s697 = scalar_lea.vmem %s19, %s696
        $region96: #{sentence_transformer_forward.1} parent=47 // pred_fallthru
          _
      $region48: #{sentence_transformer_forward.1} parent=5 // pred_fallthru
        _
      %p698 = scmp.le.s32.totalorder 1, %s33
      %p699 = scmp.lt.s32.totalorder %s33, 3
      %p700 = pnand %p698, %p699
      %p701 = pneg %p700
      // Predicated region
      $region97: #{sentence_transformer_forward.1} parent=5 // pred_check
        _
      $region98: #{sentence_transformer_forward.1} parent=5 // pred_check_branch
        %703 = sbr.rel (%p700) target = $region100
      $region99: #{sentence_transformer_forward.1} parent=5 // pred_region
        %s704 = ssub.s32 %s33, 1
        %s705 = sand.u32 %s214, 1
        %s706 = scalar_lea.sflag [#allocation4], %s705
        %s707 = sand.u32 %s214, 1
        %s708 = smul.addr %s707, 192
        %s709 = scalar_lea.vmem [#allocation3], %s708
        // Predicated region
        $region101: #{sentence_transformer_forward.1} parent=99 // pred_check
          %p710 = pneg %p227
        $region102: #{sentence_transformer_forward.1} parent=99 // pred_check_branch
          %712 = sbr.rel (%p710) target = $region104
        $region103: #{sentence_transformer_forward.1} parent=99 // pred_region
          %713 = dma.done %s706, 3072
        $region104: #{sentence_transformer_forward.1} parent=99 // pred_fallthru
          _
        %s714 = sand.u32 %s38, 1
        %s715 = scalar_lea.sflag [#allocation7], %s714
        %s716 = sand.u32 %s266, 1
        %s717 = smul.addr %s716, 64
        %s718 = scalar_lea.vmem [#allocation6], %s717
        // Predicated region
        $region105: #{sentence_transformer_forward.1} parent=99 // pred_check
          %p719 = pneg %p279
        $region106: #{sentence_transformer_forward.1} parent=99 // pred_check_branch
          %721 = sbr.rel (%p719) target = $region108
        $region107: #{sentence_transformer_forward.1} parent=99 // pred_region
          %722 = dma.done %s715, 1024
        $region108: #{sentence_transformer_forward.1} parent=99 // pred_fallthru
          _
        %s723 = sand.u32 %s38, 1
        %s724 = scalar_lea.sflag [#allocation7], %s723
        %s725 = sand.u32 %s422, 1
        %s726 = smul.addr %s725, 128
        %s727 = scalar_lea.vmem [#allocation8], %s726
        // Predicated region
        $region109: #{sentence_transformer_forward.1} parent=99 // pred_check
          %p728 = pneg %p435
        $region110: #{sentence_transformer_forward.1} parent=99 // pred_check_branch
          %730 = sbr.rel (%p728) target = $region112
        $region111: #{sentence_transformer_forward.1} parent=99 // pred_region
          %731 = dma.done %s724, 2048
        $region112: #{sentence_transformer_forward.1} parent=99 // pred_fallthru
          _
        %p732 = pneg %p54
        %p733 = pneg %p51
        %p734 = pneg %p75
        %p735 = pneg %p72
        %p736 = pneg %p96
        %p737 = pneg %p93
        %p738 = pneg %p117
        %p739 = pneg %p114
        %p740 = pneg %p138
        %p741 = pneg %p135
        %p742 = pneg %p159
        %p743 = pneg %p156
        %p744 = pneg %p180
        %p745 = pneg %p177
        %p746 = pneg %p201
        %p747 = pneg %p198
        %s748 = sand.u32 %s214, 1
        %s749 = scalar_lea.sflag [#allocation4], %s748
        %s750 = sand.u32 %s214, 1
        %s751 = smul.addr %s750, 192
        %s752 = scalar_lea.vmem [#allocation3], %s751
        %p753 = pneg %p227
        %p754 = pneg %p224
        %p755 = scmp.lt.s32.totalorder %s38, 1
        %s756 = scalar_select %p755, %s38, 1
        %s757 = smul.addr %s756, 3
        %s758 = scalar_lea.vmem %s9, %s757
        %p759 = pneg %p253
        %p760 = pneg %p250
        %s761 = sand.u32 %s38, 1
        %s762 = scalar_lea.sflag [#allocation7], %s761
        %s763 = sand.u32 %s266, 1
        %s764 = smul.addr %s763, 64
        %s765 = scalar_lea.vmem [#allocation6], %s764
        %p766 = pneg %p279
        %p767 = pneg %p276
        %p768 = scmp.lt.s32.totalorder %s38, 1
        %s769 = scalar_select %p768, %s38, 1
        %s770 = scalar_lea.vmem %s11, %s769
        %p771 = pneg %p305
        %p772 = pneg %p302
        %p773 = scmp.lt.s32.totalorder %s38, 1
        %s774 = scalar_select %p773, %s38, 1
        %s775 = scalar_lea.vmem %s12, %s774
        %p776 = pneg %p331
        %p777 = pneg %p328
        %p778 = scmp.lt.s32.totalorder %s38, 1
        %s779 = scalar_select %p778, %s38, 1
        %s780 = scalar_lea.vmem %s13, %s779
        %p781 = pneg %p357
        %p782 = pneg %p354
        %p783 = scmp.lt.s32.totalorder %s38, 1
        %s784 = scalar_select %p783, %s38, 1
        %s785 = smul.addr %s784, 32
        %s786 = smul.addr %s785, 4
        %s787 = scalar_lea.vmem %s14, %s786
        %p788 = pneg %p383
        %p789 = pneg %p380
        %p790 = scmp.lt.s32.totalorder %s38, 1
        %s791 = scalar_select %p790, %s38, 1
        %s792 = smul.addr %s791, 2
        %s793 = scalar_lea.vmem %s15, %s792
        %p794 = pneg %p409
        %p795 = pneg %p406
        %s796 = sand.u32 %s38, 1
        %s797 = scalar_lea.sflag [#allocation7], %s796
        %s798 = sand.u32 %s422, 1
        %s799 = smul.addr %s798, 128
        %s800 = scalar_lea.vmem [#allocation8], %s799
        %p801 = pneg %p435
        %p802 = pneg %p432
        %p803 = scmp.lt.s32.totalorder %s38, 1
        %s804 = scalar_select %p803, %s38, 1
        %s805 = scalar_lea.vmem %s17, %s804
        %p806 = pneg %p461
        %p807 = pneg %p458
        %p808 = scmp.lt.s32.totalorder %s38, 1
        %s809 = scalar_select %p808, %s38, 1
        %s810 = scalar_lea.vmem %s18, %s809
        %p811 = pneg %p487
        %p812 = pneg %p484
        %p813 = scmp.lt.s32.totalorder %s38, 1
        %s814 = scalar_select %p813, %s38, 1
        %s815 = scalar_lea.vmem %s19, %s814
        %p816 = pneg %p513
        %p817 = pneg %p510
        %p818 = pneg %p534
        %p819 = pneg %p531
        %p820 = scmp.lt.s32.totalorder %s38, 1
        %s821 = scalar_select %p820, %s38, 1
        %s822 = smul.addr %s821, 3
        %s823 = scalar_lea.vmem %s9, %s822
        %p824 = scmp.lt.s32.totalorder %s38, 1
        %s825 = scalar_select %p824, %s38, 1
        %s826 = scalar_lea.vmem %s11, %s825
        %p827 = scmp.lt.s32.totalorder %s38, 1
        %s828 = scalar_select %p827, %s38, 1
        %s829 = scalar_lea.vmem %s12, %s828
        %p830 = scmp.lt.s32.totalorder %s38, 1
        %s831 = scalar_select %p830, %s38, 1
        %s832 = scalar_lea.vmem %s13, %s831
        %p833 = scmp.lt.s32.totalorder %s38, 1
        %s834 = scalar_select %p833, %s38, 1
        %s835 = smul.addr %s834, 32
        %s836 = smul.addr %s835, 4
        %s837 = scalar_lea.vmem %s14, %s836
        %p838 = scmp.lt.s32.totalorder %s38, 1
        %s839 = scalar_select %p838, %s38, 1
        %s840 = smul.addr %s839, 2
        %s841 = scalar_lea.vmem %s15, %s840
        %p842 = scmp.lt.s32.totalorder %s38, 1
        %s843 = scalar_select %p842, %s38, 1
        %s844 = scalar_lea.vmem %s17, %s843
        %p845 = scmp.lt.s32.totalorder %s38, 1
        %s846 = scalar_select %p845, %s38, 1
        %s847 = scalar_lea.vmem %s18, %s846
        %p848 = scmp.lt.s32.totalorder %s38, 1
        %s849 = scalar_select %p848, %s38, 1
        %s850 = scalar_lea.vmem %s19, %s849
        %p852 = scmp.eq.s32.totalorder %s38, 0
        // Predicated region
        $region113: #{sentence_transformer_forward.1} parent=99 // pred_check
          %p853 = pneg %p852
        $region114: #{sentence_transformer_forward.1} parent=99 // pred_check_branch
          %855 = sbr.rel (%p853) target = $region116
        $region115: #{sentence_transformer_forward.1} parent=99 // pred_region
          %v856 = vld [vmem:[%s0] sm:$0xf]
          %v857 = vld [vmem:[%s0 + $0x4] sm:$0xf]
          %v858 = vld [vmem:[%s7] sm:$0xf]
          %v859 = vld [vmem:[%s7 + $0x4] sm:$0xf]
          %v860 = vld [vmem:[%s7 + $0x8] sm:$0xf]
          %v861 = vld [vmem:[%s7 + $0xc] sm:$0xf]
          %v862 = vld [vmem:[%s7 + $0x10] sm:$0xf]
          %v863 = vld [vmem:[%s7 + $0x14] sm:$0xf]
          %v864 = vld [vmem:[%s7 + $0x18] sm:$0xf]
          %v865 = vld [vmem:[%s7 + $0x1c] sm:$0xf]
          %v866 = vld [vmem:[%s1] sm:$0xff]
          %v867 = vld [vmem:[%s1 + $0x8] sm:$0xff]
          %v870 = vunpack.c.l.b16 %v856
          %v871 = vunpack.c.l.b16 %v857
          %v872 = vpack.c.b16 %v871, %v870
          %v881 = vunpack.c.l.b16 %v858
          %v882 = vunpack.c.l.b16 %v859
          %v883 = vunpack.c.l.b16 %v860
          %v884 = vunpack.c.l.b16 %v861
          %v885 = vunpack.c.l.b16 %v862
          %v886 = vunpack.c.l.b16 %v863
          %v887 = vunpack.c.l.b16 %v864
          %v888 = vunpack.c.l.b16 %v865
          %v889 = vpack.c.b16 %v882, %v881
          %v890 = vpack.c.b16 %v884, %v883
          %v891 = vpack.c.b16 %v886, %v885
          %v892 = vpack.c.b16 %v888, %v887
          %vm897 = vcmask 523264
          %v899 = vsel %vm897, %v872, 0
          %901 = vmatprep.subr.bf16.mxu0 0
          %902 = vmatpush1.bf16.msra.mxu0 %v889
          %903 = vmatprep.subr.bf16.mxu0 0
          %904 = vmatpush1.bf16.msra.mxu0 %v890
          %905 = vmatprep.subr.bf16.mxu0 0
          %906 = vmatpush1.bf16.msra.mxu0 %v891
          %907 = vmatprep.subr.bf16.mxu0 0
          %908 = vmatpush1.bf16.msra.mxu0 %v892
          %909 = vmatprep.subr.bf16.mxu0 0
          %910 = vmatpush1.bf16.msra.mxu0 0
          %911 = vmatprep.subr.bf16.mxu0 0
          %912 = vmatpush1.bf16.msra.mxu0 0
          %913 = vmatprep.subr.bf16.mxu0 0
          %914 = vmatpush1.bf16.msra.mxu0 0
          %915 = vmatprep.subr.bf16.mxu0 0
          %916 = vmatpush1.bf16.msra.mxu0 0
          %917 = vmatprep.subr.bf16.mxu0 0
          %918 = vmatpush1.bf16.msra.mxu0 0
          %919 = vmatprep.subr.bf16.mxu0 0
          %920 = vmatpush1.bf16.msra.mxu0 0
          %921 = vmatprep.subr.bf16.mxu0 0
          %922 = vmatpush1.bf16.msra.mxu0 0
          %923 = vmatprep.subr.bf16.mxu0 0
          %924 = vmatpush1.bf16.msra.mxu0 0
          %925 = vmatprep.subr.bf16.mxu0 0
          %926 = vmatpush1.bf16.msra.mxu0 0
          %927 = vmatprep.subr.bf16.mxu0 0
          %928 = vmatpush1.bf16.msra.mxu0 0
          %929 = vmatprep.subr.bf16.mxu0 0
          %930 = vmatpush1.bf16.msra.mxu0 0
          %931 = vmatprep.subr.bf16.mxu0 0
          %932 = vmatpush1.bf16.msra.mxu0 0
          %933 = vmatprep.mubr.bf16.mxu0 0
          %934 = vmatmul.mubr.bf16.gmra.mrb[0].mxu0 %v899
          %v935 = vpop.f32.mrb[0].mxu0
          %v936 = vadd.f32 %v866, %v935
          %v937 = vpop.f32.mrb[0].mxu0
          %v938 = vpop.f32.mrb[0].mxu0
          %v939 = vadd.f32 %v867, %v938
          %v940 = vpop.f32.mrb[0].mxu0
          %941 = vdwg.mxu0
          %v942 = vld [vmem:[%s2] sm:$0x1]
          %v943 = vld [vmem:[%s3] sm:$0x1]
          %944 = vadd.xlane.f32.xlu0 %v936
          %v945 = vpop.xlane.xlu0 %944
          %946 = vadd.xlane.f32.xlu0 %v939
          %v947 = vpop.xlane.xlu0 %946
          %v948 = vrcp.pop 128.0
          %v949 = vmul.f32 %v945, %v948
          %v950 = vmul.f32 %v947, %v948
          %v951 = vsub.f32 %v936, %v949
          %v952 = vsub.f32 %v939, %v950
          %v953 = vmul.f32 %v951, %v951
          %v954 = vmul.f32 %v952, %v952
          %955 = vadd.xlane.f32.xlu0 %v953
          %v956 = vpop.xlane.xlu0 %955
          %957 = vadd.xlane.f32.xlu0 %v954
          %v958 = vpop.xlane.xlu0 %957
          %v959 = vmul.f32 %v956, %v948
          %v960 = vmul.f32 %v958, %v948
          %v961 = vadd.f32 %v959, 1e-12
          %v962 = vadd.f32 %v960, 1e-12
          %v963 = vrsqrt.pop %v961
          %v964 = vrsqrt.pop %v962
          %v965 = vmul.f32 %v951, %v963
          %v966 = vmul.f32 %v952, %v964
          %v968 = vlaneseq
          %v969 = vshrl.u32 %v968, 7
          %v970 = vsub.s32 0, %v969
          %v971 = vrot.slane %v942, %v970
          %v973 = vmul.f32 %v965, %v971
          %v974 = vmul.f32 %v966, %v971
          %v976 = vlaneseq
          %v977 = vshrl.u32 %v976, 7
          %v978 = vsub.s32 0, %v977
          %v979 = vrot.slane %v943, %v978
          %v981 = vadd.f32 %v973, %v979
          %v982 = vadd.f32 %v974, %v979
          %983 = vst [vmem:[#allocation2] sm:$0xff] %v981
          %984 = vst [vmem:[#allocation2 + $0x8] sm:$0xff] %v982
        $region116: #{sentence_transformer_forward.1} parent=99 // pred_fallthru
          _
        %v985 = vld [vmem:[#allocation2] sm:$0xff]
        %v986 = vld [vmem:[#allocation2 + $0x8] sm:$0xff]
        %v987 = vpack.c.bf16 %v986, %v985
        %v988 = vld [vmem:[%s709] sm:$0xff]
        %v989 = vld [vmem:[%s709 + $0x8] sm:$0xf]
        %v990 = vld [vmem:[%s709 + $0xc] sm:$0xff]
        %v991 = vld [vmem:[%s709 + $0x14] sm:$0xf]
        %v992 = vld [vmem:[%s709 + $0x18] sm:$0xff]
        %v993 = vld [vmem:[%s709 + $0x20] sm:$0xf]
        %v994 = vld [vmem:[%s709 + $0x24] sm:$0xff]
        %v995 = vld [vmem:[%s709 + $0x2c] sm:$0xf]
        %v996 = vld [vmem:[%s709 + $0x30] sm:$0xff]
        %v997 = vld [vmem:[%s709 + $0x38] sm:$0xf]
        %v998 = vld [vmem:[%s709 + $0x3c] sm:$0xff]
        %v999 = vld [vmem:[%s709 + $0x44] sm:$0xf]
        %v1000 = vld [vmem:[%s709 + $0x48] sm:$0xff]
        %v1001 = vld [vmem:[%s709 + $0x50] sm:$0xf]
        %v1002 = vld [vmem:[%s709 + $0x54] sm:$0xff]
        %v1003 = vld [vmem:[%s709 + $0x5c] sm:$0xf]
        %v1004 = vld [vmem:[%s709 + $0x60] sm:$0xff]
        %v1005 = vld [vmem:[%s709 + $0x68] sm:$0xf]
        %v1006 = vld [vmem:[%s709 + $0x6c] sm:$0xff]
        %v1007 = vld [vmem:[%s709 + $0x74] sm:$0xf]
        %v1008 = vld [vmem:[%s709 + $0x78] sm:$0xff]
        %v1009 = vld [vmem:[%s709 + $0x80] sm:$0xf]
        %v1010 = vld [vmem:[%s709 + $0x84] sm:$0xff]
        %v1011 = vld [vmem:[%s709 + $0x8c] sm:$0xf]
        %v1012 = vld [vmem:[%s709 + $0x90] sm:$0xff]
        %v1013 = vld [vmem:[%s709 + $0x98] sm:$0xf]
        %v1014 = vld [vmem:[%s709 + $0x9c] sm:$0xff]
        %v1015 = vld [vmem:[%s709 + $0xa4] sm:$0xf]
        %v1016 = vld [vmem:[%s709 + $0xa8] sm:$0xff]
        %v1017 = vld [vmem:[%s709 + $0xb0] sm:$0xf]
        %v1018 = vld [vmem:[%s709 + $0xb4] sm:$0xff]
        %v1019 = vld [vmem:[%s709 + $0xbc] sm:$0xf]
        %v1020 = vld [vmem:[%s823] sm:$0x7]
        %v1022 = vlaneseq
        %v1023 = vshrl.u32 %v1022, 7
        %v1024 = vsub.s32 0, %v1023
        %v1025 = vrot.slane %v1020, %v1024
        %v1026 = vlaneseq
        %v1027 = vshrl.u32 %v1026, 7
        %v1028 = vsub.s32 1, %v1027
        %v1029 = vrot.slane %v1020, %v1028
        %v1030 = vlaneseq
        %v1031 = vshrl.u32 %v1030, 7
        %v1032 = vsub.s32 2, %v1031
        %v1033 = vrot.slane %v1020, %v1032
        %v1069 = vunpack.c.l.b16 %v988
        %v1070 = vunpack.c.h.b16 %v988
        %v1071 = vunpack.c.l.b16 %v989
        %v1072 = vunpack.c.l.b16 %v990
        %v1073 = vunpack.c.h.b16 %v990
        %v1074 = vunpack.c.l.b16 %v991
        %v1075 = vunpack.c.l.b16 %v992
        %v1076 = vunpack.c.h.b16 %v992
        %v1077 = vunpack.c.l.b16 %v993
        %v1078 = vunpack.c.l.b16 %v994
        %v1079 = vunpack.c.h.b16 %v994
        %v1080 = vunpack.c.l.b16 %v995
        %v1081 = vunpack.c.l.b16 %v996
        %v1082 = vunpack.c.h.b16 %v996
        %v1083 = vunpack.c.l.b16 %v997
        %v1084 = vunpack.c.l.b16 %v998
        %v1085 = vunpack.c.h.b16 %v998
        %v1086 = vunpack.c.l.b16 %v999
        %v1087 = vunpack.c.l.b16 %v1000
        %v1088 = vunpack.c.h.b16 %v1000
        %v1089 = vunpack.c.l.b16 %v1001
        %v1090 = vunpack.c.l.b16 %v1002
        %v1091 = vunpack.c.h.b16 %v1002
        %v1092 = vunpack.c.l.b16 %v1003
        %v1093 = vunpack.c.l.b16 %v1004
        %v1094 = vunpack.c.h.b16 %v1004
        %v1095 = vunpack.c.l.b16 %v1005
        %v1096 = vunpack.c.l.b16 %v1006
        %v1097 = vunpack.c.h.b16 %v1006
        %v1098 = vunpack.c.l.b16 %v1007
        %v1099 = vunpack.c.l.b16 %v1008
        %v1100 = vunpack.c.h.b16 %v1008
        %v1101 = vunpack.c.l.b16 %v1009
        %v1102 = vunpack.c.l.b16 %v1010
        %v1103 = vunpack.c.h.b16 %v1010
        %v1104 = vunpack.c.l.b16 %v1011
        %v1105 = vunpack.c.l.b16 %v1012
        %v1106 = vunpack.c.h.b16 %v1012
        %v1107 = vunpack.c.l.b16 %v1013
        %v1108 = vunpack.c.l.b16 %v1014
        %v1109 = vunpack.c.h.b16 %v1014
        %v1110 = vunpack.c.l.b16 %v1015
        %v1111 = vunpack.c.l.b16 %v1016
        %v1112 = vunpack.c.h.b16 %v1016
        %v1113 = vunpack.c.l.b16 %v1017
        %v1114 = vunpack.c.l.b16 %v1018
        %v1115 = vunpack.c.h.b16 %v1018
        %v1116 = vunpack.c.l.b16 %v1019
        %v1117 = vpack.c.b16 %v1072, %v1069
        %v1118 = vpack.c.b16 %v1073, %v1070
        %v1119 = vpack.c.b16 %v1074, %v1071
        %v1120 = vpack.c.b16 %v1078, %v1075
        %v1121 = vpack.c.b16 %v1079, %v1076
        %v1122 = vpack.c.b16 %v1080, %v1077
        %v1123 = vpack.c.b16 %v1084, %v1081
        %v1124 = vpack.c.b16 %v1085, %v1082
        %v1125 = vpack.c.b16 %v1086, %v1083
        %v1126 = vpack.c.b16 %v1090, %v1087
        %v1127 = vpack.c.b16 %v1091, %v1088
        %v1128 = vpack.c.b16 %v1092, %v1089
        %v1129 = vpack.c.b16 %v1096, %v1093
        %v1130 = vpack.c.b16 %v1097, %v1094
        %v1131 = vpack.c.b16 %v1098, %v1095
        %v1132 = vpack.c.b16 %v1102, %v1099
        %v1133 = vpack.c.b16 %v1103, %v1100
        %v1134 = vpack.c.b16 %v1104, %v1101
        %v1135 = vpack.c.b16 %v1108, %v1105
        %v1136 = vpack.c.b16 %v1109, %v1106
        %v1137 = vpack.c.b16 %v1110, %v1107
        %v1138 = vpack.c.b16 %v1114, %v1111
        %v1139 = vpack.c.b16 %v1115, %v1112
        %v1140 = vpack.c.b16 %v1116, %v1113
        %1165 = vmatprep.subr.bf16.mxu0 %v1118
        %1166 = vmatpush1.bf16.msra.mxu0 %v1117
        %1167 = vmatprep.subr.bf16.mxu0 %v1121
        %1168 = vmatpush1.bf16.msra.mxu0 %v1120
        %1169 = vmatprep.subr.bf16.mxu0 %v1124
        %1170 = vmatpush1.bf16.msra.mxu0 %v1123
        %1171 = vmatprep.subr.bf16.mxu0 %v1127
        %1172 = vmatpush1.bf16.msra.mxu0 %v1126
        %1173 = vmatprep.subr.bf16.mxu0 %v1130
        %1174 = vmatpush1.bf16.msra.mxu0 %v1129
        %1175 = vmatprep.subr.bf16.mxu0 %v1133
        %1176 = vmatpush1.bf16.msra.mxu0 %v1132
        %1177 = vmatprep.subr.bf16.mxu0 %v1136
        %1178 = vmatpush1.bf16.msra.mxu0 %v1135
        %1179 = vmatprep.subr.bf16.mxu0 %v1139
        %1180 = vmatpush1.bf16.msra.mxu0 %v1138
        %1181 = vmatprep.subr.bf16.mxu0 0
        %1182 = vmatpush1.bf16.msra.mxu0 0
        %1183 = vmatprep.subr.bf16.mxu0 0
        %1184 = vmatpush1.bf16.msra.mxu0 0
        %1185 = vmatprep.subr.bf16.mxu0 0
        %1186 = vmatpush1.bf16.msra.mxu0 0
        %1187 = vmatprep.subr.bf16.mxu0 0
        %1188 = vmatpush1.bf16.msra.mxu0 0
        %1189 = vmatprep.subr.bf16.mxu0 0
        %1190 = vmatpush1.bf16.msra.mxu0 0
        %1191 = vmatprep.subr.bf16.mxu0 0
        %1192 = vmatpush1.bf16.msra.mxu0 0
        %1193 = vmatprep.subr.bf16.mxu0 0
        %1194 = vmatpush1.bf16.msra.mxu0 0
        %1195 = vmatprep.subr.bf16.mxu0 0
        %1196 = vmatpush1.bf16.msra.mxu0 0
        %1197 = vmatprep.mubr.bf16.mxu0 0
        %1198 = vmatmul.mubr.bf16.gmra.mrb[0].mxu0 %v987
        %v1199 = vpop.f32.mrb[0].mxu0
        %v1200 = vadd.f32 %v1025, %v1199
        %v1201 = vpop.f32.mrb[0].mxu0
        %v1202 = vadd.f32 %v1029, %v1201
        %v1203 = vpop.f32.mrb[0].mxu0
        %v1204 = vadd.f32 %v1025, %v1203
        %v1205 = vpop.f32.mrb[0].mxu0
        %v1206 = vadd.f32 %v1029, %v1205
        %1207 = vdwg.mxu0
        %1208 = vmatprep.subr.bf16.mxu0 0
        %1209 = vmatpush1.bf16.msra.mxu0 %v1119
        %1210 = vmatprep.subr.bf16.mxu0 0
        %1211 = vmatpush1.bf16.msra.mxu0 %v1122
        %1212 = vmatprep.subr.bf16.mxu0 0
        %1213 = vmatpush1.bf16.msra.mxu0 %v1125
        %1214 = vmatprep.subr.bf16.mxu0 0
        %1215 = vmatpush1.bf16.msra.mxu0 %v1128
        %1216 = vmatprep.subr.bf16.mxu0 0
        %1217 = vmatpush1.bf16.msra.mxu0 %v1131
        %1218 = vmatprep.subr.bf16.mxu0 0
        %1219 = vmatpush1.bf16.msra.mxu0 %v1134
        %1220 = vmatprep.subr.bf16.mxu0 0
        %1221 = vmatpush1.bf16.msra.mxu0 %v1137
        %1222 = vmatprep.subr.bf16.mxu0 0
        %1223 = vmatpush1.bf16.msra.mxu0 %v1140
        %1224 = vmatprep.subr.bf16.mxu0 0
        %1225 = vmatpush1.bf16.msra.mxu0 0
        %1226 = vmatprep.subr.bf16.mxu0 0
        %1227 = vmatpush1.bf16.msra.mxu0 0
        %1228 = vmatprep.subr.bf16.mxu0 0
        %1229 = vmatpush1.bf16.msra.mxu0 0
        %1230 = vmatprep.subr.bf16.mxu0 0
        %1231 = vmatpush1.bf16.msra.mxu0 0
        %1232 = vmatprep.subr.bf16.mxu0 0
        %1233 = vmatpush1.bf16.msra.mxu0 0
        %1234 = vmatprep.subr.bf16.mxu0 0
        %1235 = vmatpush1.bf16.msra.mxu0 0
        %1236 = vmatprep.subr.bf16.mxu0 0
        %1237 = vmatpush1.bf16.msra.mxu0 0
        %1238 = vmatprep.subr.bf16.mxu0 0
        %1239 = vmatpush1.bf16.msra.mxu0 0
        %1240 = vmatprep.mubr.bf16.mxu0 0
        %1241 = vmatmul.mubr.bf16.gmra.mrb[0].mxu0 %v987
        %v1242 = vpop.f32.mrb[0].mxu0
        %v1243 = vadd.f32 %v1033, %v1242
        %v1244 = vpop.f32.mrb[0].mxu0
        %v1245 = vpop.f32.mrb[0].mxu0
        %v1246 = vadd.f32 %v1033, %v1245
        %v1247 = vpop.f32.mrb[0].mxu0
        %1248 = vdwg.mxu0
        %v1249 = vld [vmem:[%s5] sm:$0xff]
        %v1250 = vld [vmem:[%s5 + $0x8] sm:$0xff]
        %v1251 = vld [vmem:[%s5 + $0x10] sm:$0xff]
        %v1252 = vld [vmem:[%s5 + $0x18] sm:$0xff]
        %v1253 = vmul.f32 %v1202, %v1249
        %v1254 = vmul.f32 %v1202, %v1250
        %v1255 = vmul.f32 %v1202, %v1251
        %v1256 = vmul.f32 %v1202, %v1252
        %v1257 = vmul.f32 %v1243, %v1249
        %v1258 = vmul.f32 %v1243, %v1250
        %v1259 = vmul.f32 %v1243, %v1251
        %v1260 = vmul.f32 %v1243, %v1252
        %v1261 = vld [vmem:[%s4] sm:$0x1]
        %v1262 = vlaneseq
        %v1263 = vshrl.u32 %v1262, 7
        %v1264 = vsub.s32 0, %v1263
        %v1265 = vrot.slane %v1261, %v1264
        %1266 = vmatprep.subr.mxu0 0.0
        %1267 = vmatpush1.xpose.msra.mxu0 %v1253
        %1268 = vmatprep.subr.mxu0 0.0
        %1269 = vmatpush1.xpose.msra.mxu0 %v1254
        %1270 = vmatprep.subr.mxu0 0.0
        %1271 = vmatpush1.xpose.msra.mxu0 %v1255
        %1272 = vmatprep.subr.mxu0 0.0
        %1273 = vmatpush1.xpose.msra.mxu0 %v1256
        %1274 = vmatprep.subr.mxu0 0.0
        %1275 = vmatpush1.xpose.msra.mxu0 0.0
        %1276 = vmatprep.subr.mxu0 0.0
        %1277 = vmatpush1.xpose.msra.mxu0 0.0
        %1278 = vmatprep.subr.mxu0 0.0
        %1279 = vmatpush1.xpose.msra.mxu0 0.0
        %1280 = vmatprep.subr.mxu0 0.0
        %1281 = vmatpush1.xpose.msra.mxu0 0.0
        %1282 = vmatprep.subr.mxu0 0.0
        %1283 = vmatpush1.xpose.msra.mxu0 0.0
        %1284 = vmatprep.subr.mxu0 0.0
        %1285 = vmatpush1.xpose.msra.mxu0 0.0
        %1286 = vmatprep.subr.mxu0 0.0
        %1287 = vmatpush1.xpose.msra.mxu0 0.0
        %1288 = vmatprep.subr.mxu0 0.0
        %1289 = vmatpush1.xpose.msra.mxu0 0.0
        %1290 = vmatprep.subr.mxu0 0.0
        %1291 = vmatpush1.xpose.msra.mxu0 0.0
        %1292 = vmatprep.subr.mxu0 0.0
        %1293 = vmatpush1.xpose.msra.mxu0 0.0
        %1294 = vmatprep.subr.mxu0 0.0
        %1295 = vmatpush1.xpose.msra.mxu0 0.0
        %1296 = vmatprep.subr.mxu0 0.0
        %1297 = vmatpush1.xpose.msra.mxu0 0.0
        %1298 = vmatprep.subr.mxu0 0.0
        %1299 = vmatpush1.xpose.msra.mxu0 0.0
        %1300 = vmatprep.subr.mxu0 0.0
        %1301 = vmatpush1.xpose.msra.mxu0 0.0
        %1302 = vmatprep.subr.mxu0 0.0
        %1303 = vmatpush1.xpose.msra.mxu0 0.0
        %1304 = vmatprep.subr.mxu0 0.0
        %1305 = vmatpush1.xpose.msra.mxu0 0.0
        %1306 = vmatprep.subr.mxu0 0.0
        %1307 = vmatpush1.xpose.msra.mxu0 0.0
        %1308 = vmatprep.subr.mxu0 0.0
        %1309 = vmatpush1.xpose.msra.mxu0 0.0
        %1310 = vmatprep.subr.mxu0 0.0
        %1311 = vmatpush1.xpose.msra.mxu0 0.0
        %1312 = vmatprep.subr.mxu0 0.0
        %1313 = vmatpush1.xpose.msra.mxu0 0.0
        %1314 = vmatprep.subr.mxu0 0.0
        %1315 = vmatpush1.xpose.msra.mxu0 0.0
        %1316 = vmatprep.subr.mxu0 0.0
        %1317 = vmatpush1.xpose.msra.mxu0 0.0
        %1318 = vmatprep.subr.mxu0 0.0
        %1319 = vmatpush1.xpose.msra.mxu0 0.0
        %1320 = vmatprep.subr.mxu0 0.0
        %1321 = vmatpush1.xpose.msra.mxu0 0.0
        %1322 = vmatprep.subr.mxu0 0.0
        %1323 = vmatpush1.xpose.msra.mxu0 0.0
        %1324 = vmatprep.subr.mxu0 0.0
        %1325 = vmatpush1.xpose.msra.mxu0 0.0
        %1326 = vmatprep.subr.mxu0 0.0
        %1327 = vmatpush1.xpose.msra.mxu0 0.0
        %1328 = vmatprep.subr.mxu0 0.0
        %1329 = vmatpush1.xpose.msra.mxu0 0.0
        %1330 = vmatprep.mubr.f32.mxu0 0.0
        %1331 = vmatmul.mubr.f32.gmra.mrb[0].mxu0 %v1200
        %v1332 = vpop.f32.mrb[0].mxu0
        %v1333 = vadd.f32 %v1265, %v1332
        %v1334 = vpop.f32.mrb[0].mxu0
        %1335 = vdwg.mxu0
        %vm1336 = vcmask 261120
        %v1337 = vsel %vm1336, %v1333, -inf
        %1338 = vmax.xlane.f32.xlu0 %v1337
        %v1339 = vpop.xlane.xlu0 %1338
        %v1340 = vsub.f32 %v1333, %v1339
        %v1341 = vmul.f32 %v1340, 1.442695
        %v1342 = vpow.pop %v1341
        %v1344 = vsel %vm1336, %v1342, 0
        %1346 = vmatprep.subr.mxu0 0.0
        %1347 = vmatpush1.msra.mxu0 %v1249
        %1348 = vmatprep.subr.mxu0 0.0
        %1349 = vmatpush1.msra.mxu0 %v1250
        %1350 = vmatprep.subr.mxu0 0.0
        %1351 = vmatpush1.msra.mxu0 %v1251
        %1352 = vmatprep.subr.mxu0 0.0
        %1353 = vmatpush1.msra.mxu0 %v1252
        %1354 = vmatprep.subr.mxu0 0.0
        %1355 = vmatpush1.msra.mxu0 0.0
        %1356 = vmatprep.subr.mxu0 0.0
        %1357 = vmatpush1.msra.mxu0 0.0
        %1358 = vmatprep.subr.mxu0 0.0
        %1359 = vmatpush1.msra.mxu0 0.0
        %1360 = vmatprep.subr.mxu0 0.0
        %1361 = vmatpush1.msra.mxu0 0.0
        %1362 = vmatprep.subr.mxu0 0.0
        %1363 = vmatpush1.msra.mxu0 0.0
        %1364 = vmatprep.subr.mxu0 0.0
        %1365 = vmatpush1.msra.mxu0 0.0
        %1366 = vmatprep.subr.mxu0 0.0
        %1367 = vmatpush1.msra.mxu0 0.0
        %1368 = vmatprep.subr.mxu0 0.0
        %1369 = vmatpush1.msra.mxu0 0.0
        %1370 = vmatprep.subr.mxu0 0.0
        %1371 = vmatpush1.msra.mxu0 0.0
        %1372 = vmatprep.subr.mxu0 0.0
        %1373 = vmatpush1.msra.mxu0 0.0
        %1374 = vmatprep.subr.mxu0 0.0
        %1375 = vmatpush1.msra.mxu0 0.0
        %1376 = vmatprep.subr.mxu0 0.0
        %1377 = vmatpush1.msra.mxu0 0.0
        %1378 = vmatprep.subr.mxu0 0.0
        %1379 = vmatpush1.msra.mxu0 0.0
        %1380 = vmatprep.subr.mxu0 0.0
        %1381 = vmatpush1.msra.mxu0 0.0
        %1382 = vmatprep.subr.mxu0 0.0
        %1383 = vmatpush1.msra.mxu0 0.0
        %1384 = vmatprep.subr.mxu0 0.0
        %1385 = vmatpush1.msra.mxu0 0.0
        %1386 = vmatprep.subr.mxu0 0.0
        %1387 = vmatpush1.msra.mxu0 0.0
        %1388 = vmatprep.subr.mxu0 0.0
        %1389 = vmatpush1.msra.mxu0 0.0
        %1390 = vmatprep.subr.mxu0 0.0
        %1391 = vmatpush1.msra.mxu0 0.0
        %1392 = vmatprep.subr.mxu0 0.0
        %1393 = vmatpush1.msra.mxu0 0.0
        %1394 = vmatprep.subr.mxu0 0.0
        %1395 = vmatpush1.msra.mxu0 0.0
        %1396 = vmatprep.subr.mxu0 0.0
        %1397 = vmatpush1.msra.mxu0 0.0
        %1398 = vmatprep.subr.mxu0 0.0
        %1399 = vmatpush1.msra.mxu0 0.0
        %1400 = vmatprep.subr.mxu0 0.0
        %1401 = vmatpush1.msra.mxu0 0.0
        %1402 = vmatprep.subr.mxu0 0.0
        %1403 = vmatpush1.msra.mxu0 0.0
        %1404 = vmatprep.subr.mxu0 0.0
        %1405 = vmatpush1.msra.mxu0 0.0
        %1406 = vmatprep.subr.mxu0 0.0
        %1407 = vmatpush1.msra.mxu0 0.0
        %1408 = vmatprep.subr.mxu0 0.0
        %1409 = vmatpush1.msra.mxu0 0.0
        %1410 = vmatprep.mubr.f32.mxu0 0.0
        %1411 = vmatmul.mubr.f32.gmra.mrb[0].mxu0 %v1344
        %v1412 = vpop.f32.mrb[0].mxu0
        %v1413 = vadd.f32 0.0, %v1412
        %v1414 = vpop.f32.mrb[0].mxu0
        %1415 = vdwg.mxu0
        %1416 = vmatprep.subr.mxu0 0.0
        %1417 = vmatpush1.msra.mxu0 %v1257
        %1418 = vmatprep.subr.mxu0 0.0
        %1419 = vmatpush1.msra.mxu0 %v1258
        %1420 = vmatprep.subr.mxu0 0.0
        %1421 = vmatpush1.msra.mxu0 %v1259
        %1422 = vmatprep.subr.mxu0 0.0
        %1423 = vmatpush1.msra.mxu0 %v1260
        %1424 = vmatprep.subr.mxu0 0.0
        %1425 = vmatpush1.msra.mxu0 0.0
        %1426 = vmatprep.subr.mxu0 0.0
        %1427 = vmatpush1.msra.mxu0 0.0
        %1428 = vmatprep.subr.mxu0 0.0
        %1429 = vmatpush1.msra.mxu0 0.0
        %1430 = vmatprep.subr.mxu0 0.0
        %1431 = vmatpush1.msra.mxu0 0.0
        %1432 = vmatprep.subr.mxu0 0.0
        %1433 = vmatpush1.msra.mxu0 0.0
        %1434 = vmatprep.subr.mxu0 0.0
        %1435 = vmatpush1.msra.mxu0 0.0
        %1436 = vmatprep.subr.mxu0 0.0
        %1437 = vmatpush1.msra.mxu0 0.0
        %1438 = vmatprep.subr.mxu0 0.0
        %1439 = vmatpush1.msra.mxu0 0.0
        %1440 = vmatprep.subr.mxu0 0.0
        %1441 = vmatpush1.msra.mxu0 0.0
        %1442 = vmatprep.subr.mxu0 0.0
        %1443 = vmatpush1.msra.mxu0 0.0
        %1444 = vmatprep.subr.mxu0 0.0
        %1445 = vmatpush1.msra.mxu0 0.0
        %1446 = vmatprep.subr.mxu0 0.0
        %1447 = vmatpush1.msra.mxu0 0.0
        %1448 = vmatprep.subr.mxu0 0.0
        %1449 = vmatpush1.msra.mxu0 0.0
        %1450 = vmatprep.subr.mxu0 0.0
        %1451 = vmatpush1.msra.mxu0 0.0
        %1452 = vmatprep.subr.mxu0 0.0
        %1453 = vmatpush1.msra.mxu0 0.0
        %1454 = vmatprep.subr.mxu0 0.0
        %1455 = vmatpush1.msra.mxu0 0.0
        %1456 = vmatprep.subr.mxu0 0.0
        %1457 = vmatpush1.msra.mxu0 0.0
        %1458 = vmatprep.subr.mxu0 0.0
        %1459 = vmatpush1.msra.mxu0 0.0
        %1460 = vmatprep.subr.mxu0 0.0
        %1461 = vmatpush1.msra.mxu0 0.0
        %1462 = vmatprep.subr.mxu0 0.0
        %1463 = vmatpush1.msra.mxu0 0.0
        %1464 = vmatprep.subr.mxu0 0.0
        %1465 = vmatpush1.msra.mxu0 0.0
        %1466 = vmatprep.subr.mxu0 0.0
        %1467 = vmatpush1.msra.mxu0 0.0
        %1468 = vmatprep.subr.mxu0 0.0
        %1469 = vmatpush1.msra.mxu0 0.0
        %1470 = vmatprep.subr.mxu0 0.0
        %1471 = vmatpush1.msra.mxu0 0.0
        %1472 = vmatprep.subr.mxu0 0.0
        %1473 = vmatpush1.msra.mxu0 0.0
        %1474 = vmatprep.subr.mxu0 0.0
        %1475 = vmatpush1.msra.mxu0 0.0
        %1476 = vmatprep.subr.mxu0 0.0
        %1477 = vmatpush1.msra.mxu0 0.0
        %1478 = vmatprep.subr.mxu0 0.0
        %1479 = vmatpush1.msra.mxu0 0.0
        %1480 = vmatprep.mubr.f32.mxu0 0.0
        %1481 = vmatmul.mubr.f32.gmra.mrb[0].mxu0 %v1344
        %v1482 = vpop.f32.mrb[0].mxu0
        %v1483 = vadd.f32 0.0, %v1482
        %v1484 = vpop.f32.mrb[0].mxu0
        %1485 = vdwg.mxu0
        %v1486 = vrcp.pop %v1413
        %v1487 = vmul.f32 %v1483, %v1486
        %v1488 = vmul.f32 %v1206, %v1249
        %v1489 = vmul.f32 %v1206, %v1250
        %v1490 = vmul.f32 %v1206, %v1251
        %v1491 = vmul.f32 %v1206, %v1252
        %v1492 = vmul.f32 %v1246, %v1249
        %v1493 = vmul.f32 %v1246, %v1250
        %v1494 = vmul.f32 %v1246, %v1251
        %v1495 = vmul.f32 %v1246, %v1252
        %v1496 = vld [vmem:[%s4 + $0x1] sm:$0x1]
        %v1497 = vlaneseq
        %v1498 = vshrl.u32 %v1497, 7
        %v1499 = vsub.s32 0, %v1498
        %v1500 = vrot.slane %v1496, %v1499
        %1501 = vmatprep.subr.mxu0 0.0
        %1502 = vmatpush1.xpose.msra.mxu0 %v1488
        %1503 = vmatprep.subr.mxu0 0.0
        %1504 = vmatpush1.xpose.msra.mxu0 %v1489
        %1505 = vmatprep.subr.mxu0 0.0
        %1506 = vmatpush1.xpose.msra.mxu0 %v1490
        %1507 = vmatprep.subr.mxu0 0.0
        %1508 = vmatpush1.xpose.msra.mxu0 %v1491
        %1509 = vmatprep.subr.mxu0 0.0
        %1510 = vmatpush1.xpose.msra.mxu0 0.0
        %1511 = vmatprep.subr.mxu0 0.0
        %1512 = vmatpush1.xpose.msra.mxu0 0.0
        %1513 = vmatprep.subr.mxu0 0.0
        %1514 = vmatpush1.xpose.msra.mxu0 0.0
        %1515 = vmatprep.subr.mxu0 0.0
        %1516 = vmatpush1.xpose.msra.mxu0 0.0
        %1517 = vmatprep.subr.mxu0 0.0
        %1518 = vmatpush1.xpose.msra.mxu0 0.0
        %1519 = vmatprep.subr.mxu0 0.0
        %1520 = vmatpush1.xpose.msra.mxu0 0.0
        %1521 = vmatprep.subr.mxu0 0.0
        %1522 = vmatpush1.xpose.msra.mxu0 0.0
        %1523 = vmatprep.subr.mxu0 0.0
        %1524 = vmatpush1.xpose.msra.mxu0 0.0
        %1525 = vmatprep.subr.mxu0 0.0
        %1526 = vmatpush1.xpose.msra.mxu0 0.0
        %1527 = vmatprep.subr.mxu0 0.0
        %1528 = vmatpush1.xpose.msra.mxu0 0.0
        %1529 = vmatprep.subr.mxu0 0.0
        %1530 = vmatpush1.xpose.msra.mxu0 0.0
        %1531 = vmatprep.subr.mxu0 0.0
        %1532 = vmatpush1.xpose.msra.mxu0 0.0
        %1533 = vmatprep.subr.mxu0 0.0
        %1534 = vmatpush1.xpose.msra.mxu0 0.0
        %1535 = vmatprep.subr.mxu0 0.0
        %1536 = vmatpush1.xpose.msra.mxu0 0.0
        %1537 = vmatprep.subr.mxu0 0.0
        %1538 = vmatpush1.xpose.msra.mxu0 0.0
        %1539 = vmatprep.subr.mxu0 0.0
        %1540 = vmatpush1.xpose.msra.mxu0 0.0
        %1541 = vmatprep.subr.mxu0 0.0
        %1542 = vmatpush1.xpose.msra.mxu0 0.0
        %1543 = vmatprep.subr.mxu0 0.0
        %1544 = vmatpush1.xpose.msra.mxu0 0.0
        %1545 = vmatprep.subr.mxu0 0.0
        %1546 = vmatpush1.xpose.msra.mxu0 0.0
        %1547 = vmatprep.subr.mxu0 0.0
        %1548 = vmatpush1.xpose.msra.mxu0 0.0
        %1549 = vmatprep.subr.mxu0 0.0
        %1550 = vmatpush1.xpose.msra.mxu0 0.0
        %1551 = vmatprep.subr.mxu0 0.0
        %1552 = vmatpush1.xpose.msra.mxu0 0.0
        %1553 = vmatprep.subr.mxu0 0.0
        %1554 = vmatpush1.xpose.msra.mxu0 0.0
        %1555 = vmatprep.subr.mxu0 0.0
        %1556 = vmatpush1.xpose.msra.mxu0 0.0
        %1557 = vmatprep.subr.mxu0 0.0
        %1558 = vmatpush1.xpose.msra.mxu0 0.0
        %1559 = vmatprep.subr.mxu0 0.0
        %1560 = vmatpush1.xpose.msra.mxu0 0.0
        %1561 = vmatprep.subr.mxu0 0.0
        %1562 = vmatpush1.xpose.msra.mxu0 0.0
        %1563 = vmatprep.subr.mxu0 0.0
        %1564 = vmatpush1.xpose.msra.mxu0 0.0
        %1565 = vmatprep.mubr.f32.mxu0 0.0
        %1566 = vmatmul.mubr.f32.gmra.mrb[0].mxu0 %v1204
        %v1567 = vpop.f32.mrb[0].mxu0
        %v1568 = vadd.f32 %v1500, %v1567
        %v1569 = vpop.f32.mrb[0].mxu0
        %1570 = vdwg.mxu0
        %v1571 = vsel %vm1336, %v1568, -inf
        %1572 = vmax.xlane.f32.xlu0 %v1571
        %v1573 = vpop.xlane.xlu0 %1572
        %v1574 = vsub.f32 %v1568, %v1573
        %v1575 = vmul.f32 %v1574, 1.442695
        %v1576 = vpow.pop %v1575
        %v1578 = vsel %vm1336, %v1576, 0
        %1580 = vmatprep.subr.mxu0 0.0
        %1581 = vmatpush1.msra.mxu0 %v1249
        %1582 = vmatprep.subr.mxu0 0.0
        %1583 = vmatpush1.msra.mxu0 %v1250
        %1584 = vmatprep.subr.mxu0 0.0
        %1585 = vmatpush1.msra.mxu0 %v1251
        %1586 = vmatprep.subr.mxu0 0.0
        %1587 = vmatpush1.msra.mxu0 %v1252
        %1588 = vmatprep.subr.mxu0 0.0
        %1589 = vmatpush1.msra.mxu0 0.0
        %1590 = vmatprep.subr.mxu0 0.0
        %1591 = vmatpush1.msra.mxu0 0.0
        %1592 = vmatprep.subr.mxu0 0.0
        %1593 = vmatpush1.msra.mxu0 0.0
        %1594 = vmatprep.subr.mxu0 0.0
        %1595 = vmatpush1.msra.mxu0 0.0
        %1596 = vmatprep.subr.mxu0 0.0
        %1597 = vmatpush1.msra.mxu0 0.0
        %1598 = vmatprep.subr.mxu0 0.0
        %1599 = vmatpush1.msra.mxu0 0.0
        %1600 = vmatprep.subr.mxu0 0.0
        %1601 = vmatpush1.msra.mxu0 0.0
        %1602 = vmatprep.subr.mxu0 0.0
        %1603 = vmatpush1.msra.mxu0 0.0
        %1604 = vmatprep.subr.mxu0 0.0
        %1605 = vmatpush1.msra.mxu0 0.0
        %1606 = vmatprep.subr.mxu0 0.0
        %1607 = vmatpush1.msra.mxu0 0.0
        %1608 = vmatprep.subr.mxu0 0.0
        %1609 = vmatpush1.msra.mxu0 0.0
        %1610 = vmatprep.subr.mxu0 0.0
        %1611 = vmatpush1.msra.mxu0 0.0
        %1612 = vmatprep.subr.mxu0 0.0
        %1613 = vmatpush1.msra.mxu0 0.0
        %1614 = vmatprep.subr.mxu0 0.0
        %1615 = vmatpush1.msra.mxu0 0.0
        %1616 = vmatprep.subr.mxu0 0.0
        %1617 = vmatpush1.msra.mxu0 0.0
        %1618 = vmatprep.subr.mxu0 0.0
        %1619 = vmatpush1.msra.mxu0 0.0
        %1620 = vmatprep.subr.mxu0 0.0
        %1621 = vmatpush1.msra.mxu0 0.0
        %1622 = vmatprep.subr.mxu0 0.0
        %1623 = vmatpush1.msra.mxu0 0.0
        %1624 = vmatprep.subr.mxu0 0.0
        %1625 = vmatpush1.msra.mxu0 0.0
        %1626 = vmatprep.subr.mxu0 0.0
        %1627 = vmatpush1.msra.mxu0 0.0
        %1628 = vmatprep.subr.mxu0 0.0
        %1629 = vmatpush1.msra.mxu0 0.0
        %1630 = vmatprep.subr.mxu0 0.0
        %1631 = vmatpush1.msra.mxu0 0.0
        %1632 = vmatprep.subr.mxu0 0.0
        %1633 = vmatpush1.msra.mxu0 0.0
        %1634 = vmatprep.subr.mxu0 0.0
        %1635 = vmatpush1.msra.mxu0 0.0
        %1636 = vmatprep.subr.mxu0 0.0
        %1637 = vmatpush1.msra.mxu0 0.0
        %1638 = vmatprep.subr.mxu0 0.0
        %1639 = vmatpush1.msra.mxu0 0.0
        %1640 = vmatprep.subr.mxu0 0.0
        %1641 = vmatpush1.msra.mxu0 0.0
        %1642 = vmatprep.subr.mxu0 0.0
        %1643 = vmatpush1.msra.mxu0 0.0
        %1644 = vmatprep.mubr.f32.mxu0 0.0
        %1645 = vmatmul.mubr.f32.gmra.mrb[0].mxu0 %v1578
        %v1646 = vpop.f32.mrb[0].mxu0
        %v1647 = vadd.f32 0.0, %v1646
        %v1648 = vpop.f32.mrb[0].mxu0
        %1649 = vdwg.mxu0
        %1650 = vmatprep.subr.mxu0 0.0
        %1651 = vmatpush1.msra.mxu0 %v1492
        %1652 = vmatprep.subr.mxu0 0.0
        %1653 = vmatpush1.msra.mxu0 %v1493
        %1654 = vmatprep.subr.mxu0 0.0
        %1655 = vmatpush1.msra.mxu0 %v1494
        %1656 = vmatprep.subr.mxu0 0.0
        %1657 = vmatpush1.msra.mxu0 %v1495
        %1658 = vmatprep.subr.mxu0 0.0
        %1659 = vmatpush1.msra.mxu0 0.0
        %1660 = vmatprep.subr.mxu0 0.0
        %1661 = vmatpush1.msra.mxu0 0.0
        %1662 = vmatprep.subr.mxu0 0.0
        %1663 = vmatpush1.msra.mxu0 0.0
        %1664 = vmatprep.subr.mxu0 0.0
        %1665 = vmatpush1.msra.mxu0 0.0
        %1666 = vmatprep.subr.mxu0 0.0
        %1667 = vmatpush1.msra.mxu0 0.0
        %1668 = vmatprep.subr.mxu0 0.0
        %1669 = vmatpush1.msra.mxu0 0.0
        %1670 = vmatprep.subr.mxu0 0.0
        %1671 = vmatpush1.msra.mxu0 0.0
        %1672 = vmatprep.subr.mxu0 0.0
        %1673 = vmatpush1.msra.mxu0 0.0
        %1674 = vmatprep.subr.mxu0 0.0
        %1675 = vmatpush1.msra.mxu0 0.0
        %1676 = vmatprep.subr.mxu0 0.0
        %1677 = vmatpush1.msra.mxu0 0.0
        %1678 = vmatprep.subr.mxu0 0.0
        %1679 = vmatpush1.msra.mxu0 0.0
        %1680 = vmatprep.subr.mxu0 0.0
        %1681 = vmatpush1.msra.mxu0 0.0
        %1682 = vmatprep.subr.mxu0 0.0
        %1683 = vmatpush1.msra.mxu0 0.0
        %1684 = vmatprep.subr.mxu0 0.0
        %1685 = vmatpush1.msra.mxu0 0.0
        %1686 = vmatprep.subr.mxu0 0.0
        %1687 = vmatpush1.msra.mxu0 0.0
        %1688 = vmatprep.subr.mxu0 0.0
        %1689 = vmatpush1.msra.mxu0 0.0
        %1690 = vmatprep.subr.mxu0 0.0
        %1691 = vmatpush1.msra.mxu0 0.0
        %1692 = vmatprep.subr.mxu0 0.0
        %1693 = vmatpush1.msra.mxu0 0.0
        %1694 = vmatprep.subr.mxu0 0.0
        %1695 = vmatpush1.msra.mxu0 0.0
        %1696 = vmatprep.subr.mxu0 0.0
        %1697 = vmatpush1.msra.mxu0 0.0
        %1698 = vmatprep.subr.mxu0 0.0
        %1699 = vmatpush1.msra.mxu0 0.0
        %1700 = vmatprep.subr.mxu0 0.0
        %1701 = vmatpush1.msra.mxu0 0.0
        %1702 = vmatprep.subr.mxu0 0.0
        %1703 = vmatpush1.msra.mxu0 0.0
        %1704 = vmatprep.subr.mxu0 0.0
        %1705 = vmatpush1.msra.mxu0 0.0
        %1706 = vmatprep.subr.mxu0 0.0
        %1707 = vmatpush1.msra.mxu0 0.0
        %1708 = vmatprep.subr.mxu0 0.0
        %1709 = vmatpush1.msra.mxu0 0.0
        %1710 = vmatprep.subr.mxu0 0.0
        %1711 = vmatpush1.msra.mxu0 0.0
        %1712 = vmatprep.subr.mxu0 0.0
        %1713 = vmatpush1.msra.mxu0 0.0
        %1714 = vmatprep.mubr.f32.mxu0 0.0
        %1715 = vmatmul.mubr.f32.gmra.mrb[0].mxu0 %v1578
        %v1716 = vpop.f32.mrb[0].mxu0
        %v1717 = vadd.f32 0.0, %v1716
        %v1718 = vpop.f32.mrb[0].mxu0
        %1719 = vdwg.mxu0
        %v1720 = vrcp.pop %v1647
        %v1721 = vmul.f32 %v1717, %v1720
        %v1722 = vpack.c.bf16 %v1721, %v1487
        %v1723 = vld [vmem:[%s718] sm:$0xf]
        %v1724 = vld [vmem:[%s718 + $0x4] sm:$0xf]
        %v1725 = vld [vmem:[%s718 + $0x8] sm:$0xf]
        %v1726 = vld [vmem:[%s718 + $0xc] sm:$0xf]
        %v1727 = vld [vmem:[%s718 + $0x10] sm:$0xf]
        %v1728 = vld [vmem:[%s718 + $0x14] sm:$0xf]
        %v1729 = vld [vmem:[%s718 + $0x18] sm:$0xf]
        %v1730 = vld [vmem:[%s718 + $0x1c] sm:$0xf]
        %v1731 = vld [vmem:[%s718 + $0x20] sm:$0xf]
        %v1732 = vld [vmem:[%s718 + $0x24] sm:$0xf]
        %v1733 = vld [vmem:[%s718 + $0x28] sm:$0xf]
        %v1734 = vld [vmem:[%s718 + $0x2c] sm:$0xf]
        %v1735 = vld [vmem:[%s718 + $0x30] sm:$0xf]
        %v1736 = vld [vmem:[%s718 + $0x34] sm:$0xf]
        %v1737 = vld [vmem:[%s718 + $0x38] sm:$0xf]
        %v1738 = vld [vmem:[%s718 + $0x3c] sm:$0xf]
        %v1739 = vld [vmem:[%s826] sm:$0x1]
        %v1741 = vlaneseq
        %v1742 = vshrl.u32 %v1741, 7
        %v1743 = vsub.s32 0, %v1742
        %v1744 = vrot.slane %v1739, %v1743
        %v1762 = vunpack.c.l.b16 %v1723
        %v1763 = vunpack.c.l.b16 %v1724
        %v1764 = vunpack.c.l.b16 %v1725
        %v1765 = vunpack.c.l.b16 %v1726
        %v1766 = vunpack.c.l.b16 %v1727
        %v1767 = vunpack.c.l.b16 %v1728
        %v1768 = vunpack.c.l.b16 %v1729
        %v1769 = vunpack.c.l.b16 %v1730
        %v1770 = vunpack.c.l.b16 %v1731
        %v1771 = vunpack.c.l.b16 %v1732
        %v1772 = vunpack.c.l.b16 %v1733
        %v1773 = vunpack.c.l.b16 %v1734
        %v1774 = vunpack.c.l.b16 %v1735
        %v1775 = vunpack.c.l.b16 %v1736
        %v1776 = vunpack.c.l.b16 %v1737
        %v1777 = vunpack.c.l.b16 %v1738
        %v1778 = vpack.c.b16 %v1763, %v1762
        %v1779 = vpack.c.b16 %v1765, %v1764
        %v1780 = vpack.c.b16 %v1767, %v1766
        %v1781 = vpack.c.b16 %v1769, %v1768
        %v1782 = vpack.c.b16 %v1771, %v1770
        %v1783 = vpack.c.b16 %v1773, %v1772
        %v1784 = vpack.c.b16 %v1775, %v1774
        %v1785 = vpack.c.b16 %v1777, %v1776
        %1794 = vmatprep.subr.bf16.mxu0 0
        %1795 = vmatpush1.bf16.msra.mxu0 %v1778
        %1796 = vmatprep.subr.bf16.mxu0 0
        %1797 = vmatpush1.bf16.msra.mxu0 %v1779
        %1798 = vmatprep.subr.bf16.mxu0 0
        %1799 = vmatpush1.bf16.msra.mxu0 %v1780
        %1800 = vmatprep.subr.bf16.mxu0 0
        %1801 = vmatpush1.bf16.msra.mxu0 %v1781
        %1802 = vmatprep.subr.bf16.mxu0 0
        %1803 = vmatpush1.bf16.msra.mxu0 %v1782
        %1804 = vmatprep.subr.bf16.mxu0 0
        %1805 = vmatpush1.bf16.msra.mxu0 %v1783
        %1806 = vmatprep.subr.bf16.mxu0 0
        %1807 = vmatpush1.bf16.msra.mxu0 %v1784
        %1808 = vmatprep.subr.bf16.mxu0 0
        %1809 = vmatpush1.bf16.msra.mxu0 %v1785
        %1810 = vmatprep.subr.bf16.mxu0 0
        %1811 = vmatpush1.bf16.msra.mxu0 0
        %1812 = vmatprep.subr.bf16.mxu0 0
        %1813 = vmatpush1.bf16.msra.mxu0 0
        %1814 = vmatprep.subr.bf16.mxu0 0
        %1815 = vmatpush1.bf16.msra.mxu0 0
        %1816 = vmatprep.subr.bf16.mxu0 0
        %1817 = vmatpush1.bf16.msra.mxu0 0
        %1818 = vmatprep.subr.bf16.mxu0 0
        %1819 = vmatpush1.bf16.msra.mxu0 0
        %1820 = vmatprep.subr.bf16.mxu0 0
        %1821 = vmatpush1.bf16.msra.mxu0 0
        %1822 = vmatprep.subr.bf16.mxu0 0
        %1823 = vmatpush1.bf16.msra.mxu0 0
        %1824 = vmatprep.subr.bf16.mxu0 0
        %1825 = vmatpush1.bf16.msra.mxu0 0
        %1826 = vmatprep.mubr.bf16.mxu0 0
        %1827 = vmatmul.mubr.bf16.gmra.mrb[0].mxu0 %v1722
        %v1828 = vpop.f32.mrb[0].mxu0
        %v1829 = vadd.f32 %v1744, %v1828
        %v1830 = vpop.f32.mrb[0].mxu0
        %v1831 = vpop.f32.mrb[0].mxu0
        %v1832 = vadd.f32 %v1744, %v1831
        %v1833 = vpop.f32.mrb[0].mxu0
        %1834 = vdwg.mxu0
        %v1835 = vadd.f32 %v985, %v1829
        %v1836 = vadd.f32 %v986, %v1832
        %v1837 = vld [vmem:[%s829] sm:$0x1]
        %v1838 = vld [vmem:[%s832] sm:$0x1]
        %1839 = vadd.xlane.f32.xlu0 %v1835
        %v1840 = vpop.xlane.xlu0 %1839
        %1841 = vadd.xlane.f32.xlu0 %v1836
        %v1842 = vpop.xlane.xlu0 %1841
        %v1843 = vrcp.pop 128.0
        %v1844 = vmul.f32 %v1840, %v1843
        %v1845 = vmul.f32 %v1842, %v1843
        %v1846 = vsub.f32 %v1835, %v1844
        %v1847 = vsub.f32 %v1836, %v1845
        %v1848 = vmul.f32 %v1846, %v1846
        %v1849 = vmul.f32 %v1847, %v1847
        %1850 = vadd.xlane.f32.xlu0 %v1848
        %v1851 = vpop.xlane.xlu0 %1850
        %1852 = vadd.xlane.f32.xlu0 %v1849
        %v1853 = vpop.xlane.xlu0 %1852
        %v1854 = vmul.f32 %v1851, %v1843
        %v1855 = vmul.f32 %v1853, %v1843
        %v1856 = vadd.f32 %v1854, 1e-12
        %v1857 = vadd.f32 %v1855, 1e-12
        %v1858 = vrsqrt.pop %v1856
        %v1859 = vrsqrt.pop %v1857
        %v1860 = vmul.f32 %v1846, %v1858
        %v1861 = vmul.f32 %v1847, %v1859
        %v1863 = vlaneseq
        %v1864 = vshrl.u32 %v1863, 7
        %v1865 = vsub.s32 0, %v1864
        %v1866 = vrot.slane %v1837, %v1865
        %v1868 = vmul.f32 %v1860, %v1866
        %v1869 = vmul.f32 %v1861, %v1866
        %v1871 = vlaneseq
        %v1872 = vshrl.u32 %v1871, 7
        %v1873 = vsub.s32 0, %v1872
        %v1874 = vrot.slane %v1838, %v1873
        %v1876 = vadd.f32 %v1868, %v1874
        %v1877 = vadd.f32 %v1869, %v1874
        %v1878 = vpack.c.bf16 %v1877, %v1876
        %v1879 = vld [vmem:[%s837] sm:$0xff]
        %v1880 = vld [vmem:[%s837 + $0x8] sm:$0xff]
        %v1881 = vld [vmem:[%s837 + $0x10] sm:$0xff]
        %v1882 = vld [vmem:[%s837 + $0x18] sm:$0xff]
        %v1883 = vld [vmem:[%s837 + $0x20] sm:$0xff]
        %v1884 = vld [vmem:[%s837 + $0x28] sm:$0xff]
        %v1885 = vld [vmem:[%s837 + $0x30] sm:$0xff]
        %v1886 = vld [vmem:[%s837 + $0x38] sm:$0xff]
        %v1887 = vld [vmem:[%s837 + $0x40] sm:$0xff]
        %v1888 = vld [vmem:[%s837 + $0x48] sm:$0xff]
        %v1889 = vld [vmem:[%s837 + $0x50] sm:$0xff]
        %v1890 = vld [vmem:[%s837 + $0x58] sm:$0xff]
        %v1891 = vld [vmem:[%s837 + $0x60] sm:$0xff]
        %v1892 = vld [vmem:[%s837 + $0x68] sm:$0xff]
        %v1893 = vld [vmem:[%s837 + $0x70] sm:$0xff]
        %v1894 = vld [vmem:[%s837 + $0x78] sm:$0xff]
        %v1895 = vld [vmem:[%s841] sm:$0x3]
        %v1897 = vlaneseq
        %v1898 = vshrl.u32 %v1897, 7
        %v1899 = vsub.s32 0, %v1898
        %v1900 = vrot.slane %v1895, %v1899
        %v1901 = vlaneseq
        %v1902 = vshrl.u32 %v1901, 7
        %v1903 = vsub.s32 1, %v1902
        %v1904 = vrot.slane %v1895, %v1903
        %v1923 = vunpack.c.l.b16 %v1879
        %v1924 = vunpack.c.h.b16 %v1879
        %v1925 = vunpack.c.l.b16 %v1880
        %v1926 = vunpack.c.h.b16 %v1880
        %v1927 = vunpack.c.l.b16 %v1881
        %v1928 = vunpack.c.h.b16 %v1881
        %v1929 = vunpack.c.l.b16 %v1882
        %v1930 = vunpack.c.h.b16 %v1882
        %v1931 = vunpack.c.l.b16 %v1883
        %v1932 = vunpack.c.h.b16 %v1883
        %v1933 = vunpack.c.l.b16 %v1884
        %v1934 = vunpack.c.h.b16 %v1884
        %v1935 = vunpack.c.l.b16 %v1885
        %v1936 = vunpack.c.h.b16 %v1885
        %v1937 = vunpack.c.l.b16 %v1886
        %v1938 = vunpack.c.h.b16 %v1886
        %v1939 = vunpack.c.l.b16 %v1887
        %v1940 = vunpack.c.h.b16 %v1887
        %v1941 = vunpack.c.l.b16 %v1888
        %v1942 = vunpack.c.h.b16 %v1888
        %v1943 = vunpack.c.l.b16 %v1889
        %v1944 = vunpack.c.h.b16 %v1889
        %v1945 = vunpack.c.l.b16 %v1890
        %v1946 = vunpack.c.h.b16 %v1890
        %v1947 = vunpack.c.l.b16 %v1891
        %v1948 = vunpack.c.h.b16 %v1891
        %v1949 = vunpack.c.l.b16 %v1892
        %v1950 = vunpack.c.h.b16 %v1892
        %v1951 = vunpack.c.l.b16 %v1893
        %v1952 = vunpack.c.h.b16 %v1893
        %v1953 = vunpack.c.l.b16 %v1894
        %v1954 = vunpack.c.h.b16 %v1894
        %v1955 = vpack.c.b16 %v1925, %v1923
        %v1956 = vpack.c.b16 %v1926, %v1924
        %v1957 = vpack.c.b16 %v1929, %v1927
        %v1958 = vpack.c.b16 %v1930, %v1928
        %v1959 = vpack.c.b16 %v1933, %v1931
        %v1960 = vpack.c.b16 %v1934, %v1932
        %v1961 = vpack.c.b16 %v1937, %v1935
        %v1962 = vpack.c.b16 %v1938, %v1936
        %v1963 = vpack.c.b16 %v1941, %v1939
        %v1964 = vpack.c.b16 %v1942, %v1940
        %v1965 = vpack.c.b16 %v1945, %v1943
        %v1966 = vpack.c.b16 %v1946, %v1944
        %v1967 = vpack.c.b16 %v1949, %v1947
        %v1968 = vpack.c.b16 %v1950, %v1948
        %v1969 = vpack.c.b16 %v1953, %v1951
        %v1970 = vpack.c.b16 %v1954, %v1952
        %1987 = vmatprep.subr.bf16.mxu0 %v1956
        %1988 = vmatpush1.bf16.msra.mxu0 %v1955
        %1989 = vmatprep.subr.bf16.mxu0 %v1958
        %1990 = vmatpush1.bf16.msra.mxu0 %v1957
        %1991 = vmatprep.subr.bf16.mxu0 %v1960
        %1992 = vmatpush1.bf16.msra.mxu0 %v1959
        %1993 = vmatprep.subr.bf16.mxu0 %v1962
        %1994 = vmatpush1.bf16.msra.mxu0 %v1961
        %1995 = vmatprep.subr.bf16.mxu0 %v1964
        %1996 = vmatpush1.bf16.msra.mxu0 %v1963
        %1997 = vmatprep.subr.bf16.mxu0 %v1966
        %1998 = vmatpush1.bf16.msra.mxu0 %v1965
        %1999 = vmatprep.subr.bf16.mxu0 %v1968
        %2000 = vmatpush1.bf16.msra.mxu0 %v1967
        %2001 = vmatprep.subr.bf16.mxu0 %v1970
        %2002 = vmatpush1.bf16.msra.mxu0 %v1969
        %2003 = vmatprep.subr.bf16.mxu0 0
        %2004 = vmatpush1.bf16.msra.mxu0 0
        %2005 = vmatprep.subr.bf16.mxu0 0
        %2006 = vmatpush1.bf16.msra.mxu0 0
        %2007 = vmatprep.subr.bf16.mxu0 0
        %2008 = vmatpush1.bf16.msra.mxu0 0
        %2009 = vmatprep.subr.bf16.mxu0 0
        %2010 = vmatpush1.bf16.msra.mxu0 0
        %2011 = vmatprep.subr.bf16.mxu0 0
        %2012 = vmatpush1.bf16.msra.mxu0 0
        %2013 = vmatprep.subr.bf16.mxu0 0
        %2014 = vmatpush1.bf16.msra.mxu0 0
        %2015 = vmatprep.subr.bf16.mxu0 0
        %2016 = vmatpush1.bf16.msra.mxu0 0
        %2017 = vmatprep.subr.bf16.mxu0 0
        %2018 = vmatpush1.bf16.msra.mxu0 0
        %2019 = vmatprep.mubr.bf16.mxu0 0
        %2020 = vmatmul.mubr.bf16.gmra.mrb[0].mxu0 %v1878
        %v2021 = vpop.f32.mrb[0].mxu0
        %v2022 = vadd.f32 %v1900, %v2021
        %v2023 = vpop.f32.mrb[0].mxu0
        %v2024 = vadd.f32 %v1904, %v2023
        %v2025 = vpop.f32.mrb[0].mxu0
        %v2026 = vadd.f32 %v1900, %v2025
        %v2027 = vpop.f32.mrb[0].mxu0
        %v2028 = vadd.f32 %v1904, %v2027
        %2029 = vdwg.mxu0
        %v2030 = vmul.f32 %v2022, 0.5
        %v2031 = vmul.f32 %v2024, 0.5
        %v2032 = vmul.f32 %v2026, 0.5
        %v2033 = vmul.f32 %v2028, 0.5
        %v2034 = vmul.f32 %v2022, 0.044715
        %v2035 = vmul.f32 %v2024, 0.044715
        %v2036 = vmul.f32 %v2026, 0.044715
        %v2037 = vmul.f32 %v2028, 0.044715
        %v2038 = vmul.f32 %v2034, %v2022
        %v2039 = vmul.f32 %v2035, %v2024
        %v2040 = vmul.f32 %v2036, %v2026
        %v2041 = vmul.f32 %v2037, %v2028
        %v2042 = vmul.f32 %v2038, %v2022
        %v2043 = vmul.f32 %v2039, %v2024
        %v2044 = vmul.f32 %v2040, %v2026
        %v2045 = vmul.f32 %v2041, %v2028
        %v2046 = vadd.f32 %v2022, %v2042
        %v2047 = vadd.f32 %v2024, %v2043
        %v2048 = vadd.f32 %v2026, %v2044
        %v2049 = vadd.f32 %v2028, %v2045
        %v2050 = vmul.f32 %v2046, 0.7978846
        %v2051 = vmul.f32 %v2047, 0.7978846
        %v2052 = vmul.f32 %v2048, 0.7978846
        %v2053 = vmul.f32 %v2049, 0.7978846
        %v2054 = vtanh.pop %v2050
        %v2055 = vtanh.pop %v2051
        %v2056 = vtanh.pop %v2052
        %v2057 = vtanh.pop %v2053
        %v2058 = vadd.f32 %v2054, 1.0
        %v2059 = vadd.f32 %v2055, 1.0
        %v2060 = vadd.f32 %v2056, 1.0
        %v2061 = vadd.f32 %v2057, 1.0
        %v2062 = vmul.f32 %v2030, %v2058
        %v2063 = vmul.f32 %v2031, %v2059
        %v2064 = vmul.f32 %v2032, %v2060
        %v2065 = vmul.f32 %v2033, %v2061
        %v2066 = vpack.c.bf16 %v2064, %v2062
        %v2067 = vpack.c.bf16 %v2065, %v2063
        %v2068 = vld [vmem:[%s727] sm:$0xf]
        %v2069 = vld [vmem:[%s727 + $0x4] sm:$0xf]
        %v2070 = vld [vmem:[%s727 + $0x8] sm:$0xf]
        %v2071 = vld [vmem:[%s727 + $0xc] sm:$0xf]
        %v2072 = vld [vmem:[%s727 + $0x10] sm:$0xf]
        %v2073 = vld [vmem:[%s727 + $0x14] sm:$0xf]
        %v2074 = vld [vmem:[%s727 + $0x18] sm:$0xf]
        %v2075 = vld [vmem:[%s727 + $0x1c] sm:$0xf]
        %v2076 = vld [vmem:[%s727 + $0x20] sm:$0xf]
        %v2077 = vld [vmem:[%s727 + $0x24] sm:$0xf]
        %v2078 = vld [vmem:[%s727 + $0x28] sm:$0xf]
        %v2079 = vld [vmem:[%s727 + $0x2c] sm:$0xf]
        %v2080 = vld [vmem:[%s727 + $0x30] sm:$0xf]
        %v2081 = vld [vmem:[%s727 + $0x34] sm:$0xf]
        %v2082 = vld [vmem:[%s727 + $0x38] sm:$0xf]
        %v2083 = vld [vmem:[%s727 + $0x3c] sm:$0xf]
        %v2084 = vld [vmem:[%s727 + $0x40] sm:$0xf]
        %v2085 = vld [vmem:[%s727 + $0x44] sm:$0xf]
        %v2086 = vld [vmem:[%s727 + $0x48] sm:$0xf]
        %v2087 = vld [vmem:[%s727 + $0x4c] sm:$0xf]
        %v2088 = vld [vmem:[%s727 + $0x50] sm:$0xf]
        %v2089 = vld [vmem:[%s727 + $0x54] sm:$0xf]
        %v2090 = vld [vmem:[%s727 + $0x58] sm:$0xf]
        %v2091 = vld [vmem:[%s727 + $0x5c] sm:$0xf]
        %v2092 = vld [vmem:[%s727 + $0x60] sm:$0xf]
        %v2093 = vld [vmem:[%s727 + $0x64] sm:$0xf]
        %v2094 = vld [vmem:[%s727 + $0x68] sm:$0xf]
        %v2095 = vld [vmem:[%s727 + $0x6c] sm:$0xf]
        %v2096 = vld [vmem:[%s727 + $0x70] sm:$0xf]
        %v2097 = vld [vmem:[%s727 + $0x74] sm:$0xf]
        %v2098 = vld [vmem:[%s727 + $0x78] sm:$0xf]
        %v2099 = vld [vmem:[%s727 + $0x7c] sm:$0xf]
        %v2100 = vld [vmem:[%s844] sm:$0x1]
        %v2102 = vlaneseq
        %v2103 = vshrl.u32 %v2102, 7
        %v2104 = vsub.s32 0, %v2103
        %v2105 = vrot.slane %v2100, %v2104
        %v2139 = vunpack.c.l.b16 %v2068
        %v2140 = vunpack.c.l.b16 %v2069
        %v2141 = vunpack.c.l.b16 %v2070
        %v2142 = vunpack.c.l.b16 %v2071
        %v2143 = vunpack.c.l.b16 %v2072
        %v2144 = vunpack.c.l.b16 %v2073
        %v2145 = vunpack.c.l.b16 %v2074
        %v2146 = vunpack.c.l.b16 %v2075
        %v2147 = vunpack.c.l.b16 %v2076
        %v2148 = vunpack.c.l.b16 %v2077
        %v2149 = vunpack.c.l.b16 %v2078
        %v2150 = vunpack.c.l.b16 %v2079
        %v2151 = vunpack.c.l.b16 %v2080
        %v2152 = vunpack.c.l.b16 %v2081
        %v2153 = vunpack.c.l.b16 %v2082
        %v2154 = vunpack.c.l.b16 %v2083
        %v2155 = vunpack.c.l.b16 %v2084
        %v2156 = vunpack.c.l.b16 %v2085
        %v2157 = vunpack.c.l.b16 %v2086
        %v2158 = vunpack.c.l.b16 %v2087
        %v2159 = vunpack.c.l.b16 %v2088
        %v2160 = vunpack.c.l.b16 %v2089
        %v2161 = vunpack.c.l.b16 %v2090
        %v2162 = vunpack.c.l.b16 %v2091
        %v2163 = vunpack.c.l.b16 %v2092
        %v2164 = vunpack.c.l.b16 %v2093
        %v2165 = vunpack.c.l.b16 %v2094
        %v2166 = vunpack.c.l.b16 %v2095
        %v2167 = vunpack.c.l.b16 %v2096
        %v2168 = vunpack.c.l.b16 %v2097
        %v2169 = vunpack.c.l.b16 %v2098
        %v2170 = vunpack.c.l.b16 %v2099
        %v2171 = vpack.c.b16 %v2140, %v2139
        %v2172 = vpack.c.b16 %v2142, %v2141
        %v2173 = vpack.c.b16 %v2144, %v2143
        %v2174 = vpack.c.b16 %v2146, %v2145
        %v2175 = vpack.c.b16 %v2148, %v2147
        %v2176 = vpack.c.b16 %v2150, %v2149
        %v2177 = vpack.c.b16 %v2152, %v2151
        %v2178 = vpack.c.b16 %v2154, %v2153
        %v2179 = vpack.c.b16 %v2156, %v2155
        %v2180 = vpack.c.b16 %v2158, %v2157
        %v2181 = vpack.c.b16 %v2160, %v2159
        %v2182 = vpack.c.b16 %v2162, %v2161
        %v2183 = vpack.c.b16 %v2164, %v2163
        %v2184 = vpack.c.b16 %v2166, %v2165
        %v2185 = vpack.c.b16 %v2168, %v2167
        %v2186 = vpack.c.b16 %v2170, %v2169
        %2203 = vmatprep.subr.bf16.mxu0 0
        %2204 = vmatpush1.bf16.msra.mxu0 %v2171
        %2205 = vmatprep.subr.bf16.mxu0 0
        %2206 = vmatpush1.bf16.msra.mxu0 %v2172
        %2207 = vmatprep.subr.bf16.mxu0 0
        %2208 = vmatpush1.bf16.msra.mxu0 %v2173
        %2209 = vmatprep.subr.bf16.mxu0 0
        %2210 = vmatpush1.bf16.msra.mxu0 %v2174
        %2211 = vmatprep.subr.bf16.mxu0 0
        %2212 = vmatpush1.bf16.msra.mxu0 %v2175
        %2213 = vmatprep.subr.bf16.mxu0 0
        %2214 = vmatpush1.bf16.msra.mxu0 %v2176
        %2215 = vmatprep.subr.bf16.mxu0 0
        %2216 = vmatpush1.bf16.msra.mxu0 %v2177
        %2217 = vmatprep.subr.bf16.mxu0 0
        %2218 = vmatpush1.bf16.msra.mxu0 %v2178
        %2219 = vmatprep.subr.bf16.mxu0 0
        %2220 = vmatpush1.bf16.msra.mxu0 %v2179
        %2221 = vmatprep.subr.bf16.mxu0 0
        %2222 = vmatpush1.bf16.msra.mxu0 %v2180
        %2223 = vmatprep.subr.bf16.mxu0 0
        %2224 = vmatpush1.bf16.msra.mxu0 %v2181
        %2225 = vmatprep.subr.bf16.mxu0 0
        %2226 = vmatpush1.bf16.msra.mxu0 %v2182
        %2227 = vmatprep.subr.bf16.mxu0 0
        %2228 = vmatpush1.bf16.msra.mxu0 %v2183
        %2229 = vmatprep.subr.bf16.mxu0 0
        %2230 = vmatpush1.bf16.msra.mxu0 %v2184
        %2231 = vmatprep.subr.bf16.mxu0 0
        %2232 = vmatpush1.bf16.msra.mxu0 %v2185
        %2233 = vmatprep.subr.bf16.mxu0 0
        %2234 = vmatpush1.bf16.msra.mxu0 %v2186
        %2235 = vmatprep.mubr.bf16.mxu0 %v2067
        %2236 = vmatmul.mubr.bf16.gmra.mrb[0].mxu0 %v2066
        %v2237 = vpop.f32.mrb[0].mxu0
        %v2238 = vadd.f32 %v2105, %v2237
        %v2239 = vpop.f32.mrb[0].mxu0
        %v2240 = vpop.f32.mrb[0].mxu0
        %v2241 = vadd.f32 %v2105, %v2240
        %v2242 = vpop.f32.mrb[0].mxu0
        %2243 = vdwg.mxu0
        %v2244 = vadd.f32 %v1876, %v2238
        %v2245 = vadd.f32 %v1877, %v2241
        %v2246 = vld [vmem:[%s847] sm:$0x1]
        %v2247 = vld [vmem:[%s850] sm:$0x1]
        %2248 = vadd.xlane.f32.xlu0 %v2244
        %v2249 = vpop.xlane.xlu0 %2248
        %2250 = vadd.xlane.f32.xlu0 %v2245
        %v2251 = vpop.xlane.xlu0 %2250
        %v2252 = vmul.f32 %v2249, %v1843
        %v2253 = vmul.f32 %v2251, %v1843
        %v2254 = vsub.f32 %v2244, %v2252
        %v2255 = vsub.f32 %v2245, %v2253
        %v2256 = vmul.f32 %v2254, %v2254
        %v2257 = vmul.f32 %v2255, %v2255
        %2258 = vadd.xlane.f32.xlu0 %v2256
        %v2259 = vpop.xlane.xlu0 %2258
        %2260 = vadd.xlane.f32.xlu0 %v2257
        %v2261 = vpop.xlane.xlu0 %2260
        %v2262 = vmul.f32 %v2259, %v1843
        %v2263 = vmul.f32 %v2261, %v1843
        %v2264 = vadd.f32 %v2262, 1e-12
        %v2265 = vadd.f32 %v2263, 1e-12
        %v2266 = vrsqrt.pop %v2264
        %v2267 = vrsqrt.pop %v2265
        %v2268 = vmul.f32 %v2254, %v2266
        %v2269 = vmul.f32 %v2255, %v2267
        %v2271 = vlaneseq
        %v2272 = vshrl.u32 %v2271, 7
        %v2273 = vsub.s32 0, %v2272
        %v2274 = vrot.slane %v2246, %v2273
        %v2276 = vmul.f32 %v2268, %v2274
        %v2277 = vmul.f32 %v2269, %v2274
        %v2279 = vlaneseq
        %v2280 = vshrl.u32 %v2279, 7
        %v2281 = vsub.s32 0, %v2280
        %v2282 = vrot.slane %v2247, %v2281
        %v2284 = vadd.f32 %v2276, %v2282
        %v2285 = vadd.f32 %v2277, %v2282
        %2286 = vst [vmem:[#allocation2] sm:$0xff] %v2284
        %2287 = vst [vmem:[#allocation2 + $0x8] sm:$0xff] %v2285
        %p2288 = scmp.eq.s32.totalorder %s38, 1
        // Predicated region
        $region117: #{sentence_transformer_forward.1} parent=99 // pred_check
          %p2289 = pneg %p2288
        $region118: #{sentence_transformer_forward.1} parent=99 // pred_check_branch
          %2291 = sbr.rel (%p2289) target = $region120
        $region119: #{sentence_transformer_forward.1} parent=99 // pred_region
          %v2292 = vld [vmem:[%s6] sm:$0x3]
          %vm2293 = vcmask 130048
          %v2295 = vsel %vm2293, %v2292, 0
          %2297 = vmatprep.subr.mxu0 0.0
          %2298 = vmatpush1.msra.mxu0 %v2284
          %2299 = vmatprep.subr.mxu0 0.0
          %2300 = vmatpush1.msra.mxu0 %v2285
          %2301 = vmatprep.subr.mxu0 0.0
          %2302 = vmatpush1.msra.mxu0 0.0
          %2303 = vmatprep.subr.mxu0 0.0
          %2304 = vmatpush1.msra.mxu0 0.0
          %2305 = vmatprep.subr.mxu0 0.0
          %2306 = vmatpush1.msra.mxu0 0.0
          %2307 = vmatprep.subr.mxu0 0.0
          %2308 = vmatpush1.msra.mxu0 0.0
          %2309 = vmatprep.subr.mxu0 0.0
          %2310 = vmatpush1.msra.mxu0 0.0
          %2311 = vmatprep.subr.mxu0 0.0
          %2312 = vmatpush1.msra.mxu0 0.0
          %2313 = vmatprep.subr.mxu0 0.0
          %2314 = vmatpush1.msra.mxu0 0.0
          %2315 = vmatprep.subr.mxu0 0.0
          %2316 = vmatpush1.msra.mxu0 0.0
          %2317 = vmatprep.subr.mxu0 0.0
          %2318 = vmatpush1.msra.mxu0 0.0
          %2319 = vmatprep.subr.mxu0 0.0
          %2320 = vmatpush1.msra.mxu0 0.0
          %2321 = vmatprep.subr.mxu0 0.0
          %2322 = vmatpush1.msra.mxu0 0.0
          %2323 = vmatprep.subr.mxu0 0.0
          %2324 = vmatpush1.msra.mxu0 0.0
          %2325 = vmatprep.subr.mxu0 0.0
          %2326 = vmatpush1.msra.mxu0 0.0
          %2327 = vmatprep.subr.mxu0 0.0
          %2328 = vmatpush1.msra.mxu0 0.0
          %2329 = vmatprep.subr.mxu0 0.0
          %2330 = vmatpush1.msra.mxu0 0.0
          %2331 = vmatprep.subr.mxu0 0.0
          %2332 = vmatpush1.msra.mxu0 0.0
          %2333 = vmatprep.subr.mxu0 0.0
          %2334 = vmatpush1.msra.mxu0 0.0
          %2335 = vmatprep.subr.mxu0 0.0
          %2336 = vmatpush1.msra.mxu0 0.0
          %2337 = vmatprep.subr.mxu0 0.0
          %2338 = vmatpush1.msra.mxu0 0.0
          %2339 = vmatprep.subr.mxu0 0.0
          %2340 = vmatpush1.msra.mxu0 0.0
          %2341 = vmatprep.subr.mxu0 0.0
          %2342 = vmatpush1.msra.mxu0 0.0
          %2343 = vmatprep.subr.mxu0 0.0
          %2344 = vmatpush1.msra.mxu0 0.0
          %2345 = vmatprep.subr.mxu0 0.0
          %2346 = vmatpush1.msra.mxu0 0.0
          %2347 = vmatprep.subr.mxu0 0.0
          %2348 = vmatpush1.msra.mxu0 0.0
          %2349 = vmatprep.subr.mxu0 0.0
          %2350 = vmatpush1.msra.mxu0 0.0
          %2351 = vmatprep.subr.mxu0 0.0
          %2352 = vmatpush1.msra.mxu0 0.0
          %2353 = vmatprep.subr.mxu0 0.0
          %2354 = vmatpush1.msra.mxu0 0.0
          %2355 = vmatprep.subr.mxu0 0.0
          %2356 = vmatpush1.msra.mxu0 0.0
          %2357 = vmatprep.subr.mxu0 0.0
          %2358 = vmatpush1.msra.mxu0 0.0
          %2359 = vmatprep.subr.mxu0 0.0
          %2360 = vmatpush1.msra.mxu0 0.0
          %2361 = vmatprep.mubr.f32.mxu0 0.0
          %2362 = vmatmul.mubr.f32.gmra.mrb[0].mxu0 %v2295
          %v2363 = vpop.f32.mrb[0].mxu0
          %v2364 = vadd.f32 0.0, %v2363
          %v2365 = vpop.f32.mrb[0].mxu0
          %2366 = vdwg.mxu0
          %2367 = vst [vmem:[#allocation9] sm:$0x3] %v2364
        $region120: #{sentence_transformer_forward.1} parent=99 // pred_fallthru
          _
        // Predicated region
        $region121: #{sentence_transformer_forward.1} parent=99 // pred_check
          %p2368 = pneg %p531
        $region122: #{sentence_transformer_forward.1} parent=99 // pred_check_branch
          %2370 = sbr.rel (%p2368) target = $region124
        $region123: #{sentence_transformer_forward.1} parent=99 // pred_region
          %s2372 = ssub.s32 32, 32
          %2373 = vsyncadd [#allocation5], %s2372
          %s2375 = sshll.u32 [#allocation9], 4
          %s2376 = int_to_ptr.vmem [resolvable:$true] %s2375
          %2378 = dma.vmem_to_hbm [thread:$0]  %s2376, 32, %s20, [#allocation5]
        $region124: #{sentence_transformer_forward.1} parent=99 // pred_fallthru
          _
        // Predicated region
        $region125: #{sentence_transformer_forward.1} parent=99 // pred_check
          %p2379 = pneg %p531
        $region126: #{sentence_transformer_forward.1} parent=99 // pred_check_branch
          %2381 = sbr.rel (%p2379) target = $region128
        $region127: #{sentence_transformer_forward.1} parent=99 // pred_region
          %2382 = dma.done [#allocation5], 32
        $region128: #{sentence_transformer_forward.1} parent=99 // pred_fallthru
          _
      $region100: #{sentence_transformer_forward.1} parent=5 // pred_fallthru
        _
      %p2383 = scmp.le.s32.totalorder 2, %s33
      // Predicated region
      $region129: #{sentence_transformer_forward.1} parent=5 // pred_check
        %p2384 = pneg %p2383
      $region130: #{sentence_transformer_forward.1} parent=5 // pred_check_branch
        %2386 = sbr.rel (%p2384) target = $region132
      $region131: #{sentence_transformer_forward.1} parent=5 // pred_region
        %s2387 = ssub.s32 %s33, 2
      $region132: #{sentence_transformer_forward.1} parent=5 // pred_fallthru
        _
    $region6: #{sentence_transformer_forward.1} parent=1 // loop_footer
      %s37 = sadd.s32 1, %s33
    $region7: #{sentence_transformer_forward.1} parent=1 // loop_footer_branch
      %32 = sbr.rel target = $region3
    $region8: #{sentence_transformer_forward.1} parent=1 // loop_exit
      _
    %2388 = vsyncpa [#allocation4], 1
    %s2389 = scalar_lea.sflag [#allocation4], 1
    %2390 = vsyncpa %s2389, 1
    %2391 = vsyncpa [#allocation7], 1
    %s2392 = scalar_lea.sflag [#allocation7], 1
    %2393 = vsyncpa %s2392, 1
    %2394 = vsyncpa [#allocation5], 1
    %s2395 = scalar_lea.sflag [#allocation5], 1
    %2396 = vsyncpa %s2395, 1

</llo_original>
